<compile_context>
chip_gen: v5e
topology: v5e:2x2
jax: 0.10.0
libtpu: 0.0.40
codegen_flags: <defaults>
</compile_context>

<pallas_src>
import jax
import jax.numpy as jnp
from jax.experimental import pallas as pl
from jax.experimental.pallas import tpu as pltpu

# ----------------------------- model config (small) --------------------------
B = 2            # batch
S = 8            # sequence length
H = 64           # hidden size        (original module: 768)
NH = 2           # attention heads
HD = H // NH     # head dim
FFN = 4 * H      # feed-forward inner dim
NUM_LAYERS = 2
VOCAB = 32
NUM_SEG = 2
NUM_CLASSES = 15
CLS_PAD = 128    # classifier columns padded to a full lane width
LN_EPS = 1e-12
ATTN_SCALE = HD ** -0.5
_SQRT1_2 = 0.7071067811865476

# vec_slab row layout: [emb_ln_g, emb_ln_b] + per layer
# [bq, bk, bv, bo, ln1_g, ln1_b, b2, ln2_g, ln2_b]
ROWS_PER_LAYER = 9
R_BQ, R_BK, R_BV, R_BO, R_LN1G, R_LN1B, R_B2, R_LN2G, R_LN2B = range(ROWS_PER_LAYER)
NVEC = 2 + ROWS_PER_LAYER * NUM_LAYERS


# ----------------------------- in-kernel helpers ------------------------------
def _layernorm(x, gamma, beta):
    # Single-pass statistics (one reduction for sum and sum-of-squares) with the
    # variance clamped at 0 so rsqrt never sees a tiny negative (review fix).
    inv_n = 1.0 / x.shape[-1]
    mu = jnp.sum(x, axis=-1, keepdims=True) * inv_n
    ex2 = jnp.sum(x * x, axis=-1, keepdims=True) * inv_n
    var = jnp.maximum(ex2 - mu * mu, 0.0)
    return (x - mu) * jax.lax.rsqrt(var + LN_EPS) * gamma + beta


def _erf_approx(x):
    # Abramowitz & Stegun 7.1.26 rational approximation, |abs err| <= 1.5e-7
    # (exact erf at f32 precision); only VPU ops + one EUP exp.
    a1, a2, a3, a4, a5 = 0.254829592, -0.284496736, 1.421413741, -1.453152027, 1.061405429
    p = 0.3275911
    sign = jnp.where(x >= 0.0, 1.0, -1.0)
    ax = jnp.abs(x)
    t = 1.0 / (1.0 + p * ax)
    poly = ((((a5 * t + a4) * t + a3) * t + a2) * t + a1) * t
    return sign * (1.0 - poly * jnp.exp(-ax * ax))


def _gelu_exact(x):
    # erf-based GELU (matches PyTorch F.gelu default), not the tanh approximation.
    return 0.5 * x * (1.0 + _erf_approx(x * _SQRT1_2))


# ----------------------------- fused kernel -----------------------------------
def fused_bert_kernel(emb_ref, mask_ref, vec_ref, b1_ref,
                      wqkv_ref, wo_ref, w1_ref, w2_ref,
                      fcw_ref, fcb_ref, out_ref):
    def vec(row):                       # static (1, H) slice of the packed slab
        return vec_ref[row:row + 1, :]

    x = emb_ref[...]                    # (B*S, H), flattened on the host
    x = _layernorm(x, vec(0), vec(1))

    mask = mask_ref[...]                # (B*NH, S, S) additive key-padding bias

    for l in range(NUM_LAYERS):         # static unroll (NUM_LAYERS=2)
        base = 2 + l * ROWS_PER_LAYER

        # ---- fused QKV projection: ONE (B*S,H)@(H,3H) MXU pass ---------------
        qkv = jnp.dot(x, wqkv_ref[l], preferred_element_type=jnp.float32)  # (B*S, 3H)

        def split_heads(y2d, bias_row):
            # (B*S, H) -> (NH*B, S, HD): heads folded into the batch dim
            # (head-major) via lane slices + leading-axis concat (no 4-D transpose).
            y3 = (y2d + vec(bias_row)).reshape(B, S, H)
            return jnp.concatenate(
                [y3[:, :, h * HD:(h + 1) * HD] for h in range(NH)], axis=0)

        q = split_heads(qkv[:, 0 * H:1 * H], base + R_BQ)
        k = split_heads(qkv[:, 1 * H:2 * H], base + R_BK)
        v = split_heads(qkv[:, 2 * H:3 * H], base + R_BV)

        # ---- attention, batched over B*NH ------------------------------------
        scores = jnp.einsum('bqd,bkd->bqk', q, k,
                            preferred_element_type=jnp.float32) * ATTN_SCALE
        scores = scores + mask
        m = jnp.max(scores, axis=-1, keepdims=True)
        e = jnp.exp(scores - m)
        # approx reciprocal (EUP slot); ~2^-12 rel error, fine for classification.
        probs = e * pl.reciprocal(jnp.sum(e, axis=-1, keepdims=True), approx=True)
        ctx = jnp.einsum('bqk,bkd->bqd', probs, v,
                         preferred_element_type=jnp.float32)       # (NH*B, S, HD)

        # ---- merge heads (lane concat) + SINGLE output projection ------------
        ctx2d = jnp.concatenate(
            [ctx[h * B:(h + 1) * B] for h in range(NH)], axis=-1).reshape(B * S, H)
        attn = (jnp.dot(ctx2d, wo_ref[l], preferred_element_type=jnp.float32)
                + vec(base + R_BO))
        x = _layernorm(x + attn, vec(base + R_LN1G), vec(base + R_LN1B))

        # ---- feed-forward -----------------------------------------------------
        hmid = _gelu_exact(jnp.dot(x, w1_ref[l],
                                   preferred_element_type=jnp.float32) + b1_ref[l])
        ffn = jnp.dot(hmid, w2_ref[l], preferred_element_type=jnp.float32) + vec(base + R_B2)
        x = _layernorm(x + ffn, vec(base + R_LN2G), vec(base + R_LN2B))

    # ---- classifier (fused): lane-dense (B*S, 128) output; CLS rows and the
    # real class columns are sliced outside the kernel (keeps the store a full
    # unmasked vst).  nn.Dropout(p=0.5) on cls_rep is identity at inference.
    out_ref[...] = (jnp.dot(x, fcw_ref[...], preferred_element_type=jnp.float32)
                    + fcb_ref[...])


# ----------------------------- wrapper -----------------------------------------
def _full_spec(shape):
    n = len(shape)
    return pl.BlockSpec(shape, lambda: (0,) * n)


def fused_forward(emb2d, mask_full, p):
    args = (emb2d, mask_full, p["vec_slab"], p["b1"],
            p["wqkv"], p["wo"], p["w1"], p["w2"],
            p["fc_w_pad"], p["fc_b_pad"])
    return pl.pallas_call(
        fused_bert_kernel,
        out_shape=jax.ShapeDtypeStruct((B * S, CLS_PAD), jnp.float32),
        in_specs=[_full_spec(a.shape) for a in args],
        out_specs=_full_spec((B * S, CLS_PAD)),
        compiler_params=pltpu.CompilerParams(vmem_limit_bytes=16 * 1024 * 1024),
    )(*args)


# ----------------------------- parameter init ---------------------------------
def init_params(key):
    # TODO(synk): at H=768 store matmul weights in bf16 (f32 accumulation via
    # preferred_element_type) — negligible at this toy size, mandatory at scale.
    def nrm(k, shape, scale=0.02):
        return scale * jax.random.normal(k, shape, dtype=jnp.float32)

    keys = iter(jax.random.split(key, 16))
    L = NUM_LAYERS
    ones = jnp.ones((H,), jnp.float32)
    zeros = jnp.zeros((H,), jnp.float32)

    # Packed H-wide vector slab (biases + LN params), one DMA instead of 14.
    rows = [ones, zeros]                                     # emb_ln_g, emb_ln_b
    for _ in range(L):
        rows += [zeros, zeros, zeros, zeros,                 # bq, bk, bv, bo
                 ones, zeros,                                # ln1_g, ln1_b
                 zeros, ones, zeros]                         # b2, ln2_g, ln2_b
    vec_slab = jnp.stack(rows, axis=0)                       # (NVEC, H)
    assert vec_slab.shape == (NVEC, H)

    # Classifier weights padded to a full 128-lane output width ONCE (host).
    fc_w = nrm(next(keys), (H, NUM_CLASSES))
    fc_b = jnp.zeros((NUM_CLASSES,), jnp.float32)
    fc_w_pad = jnp.zeros((H, CLS_PAD), jnp.float32).at[:, :NUM_CLASSES].set(fc_w)
    fc_b_pad = jnp.zeros((1, CLS_PAD), jnp.float32).at[0, :NUM_CLASSES].set(fc_b)

    return {
        "tok_emb": nrm(next(keys), (VOCAB, H)),
        "seg_emb": nrm(next(keys), (NUM_SEG, H)),
        "pos_emb": nrm(next(keys), (S, H)),
        "vec_slab": vec_slab,
        # Fused QKV weight: columns [Q | K | V], head-major within each H block.
        "wqkv": nrm(next(keys), (L, H, 3 * H)),
        # Output projection over the head-concatenated context: rows (head, dim).
        "wo": nrm(next(keys), (L, H, H)),
        "w1": nrm(next(keys), (L, H, FFN)),
        "b1": jnp.zeros((L, 1, FFN), jnp.float32),
        "w2": nrm(next(keys), (L, FFN, H)),
        "fc_w_pad": fc_w_pad,
        "fc_b_pad": fc_b_pad,
    }


# ----------------------------- forward -----------------------------------------
@jax.jit
def forward(params, token_ids, segment_ids):
    # Embedding gather (plain-JAX glue; data-dependent gather stays outside),
    # flattened to (B*S, H) on the host so the kernel gets a clean 2-D slab.
    emb = (params["tok_emb"][token_ids]
           + params["seg_emb"][segment_ids]
           + params["pos_emb"][None, :, :])                  # (B, S, H)
    emb2d = emb.reshape(B * S, H)

    # BERT key-padding mask (token_id == 0 is padding), pre-broadcast on the
    # host to the full (B*NH, S, S) score shape (head-major batch order) so the
    # kernel does a shape-exact add with no in-kernel broadcast.
    key_bias = jnp.where(token_ids == 0, -1e9, 0.0).astype(jnp.float32)   # (B, S)
    mask_b = jnp.broadcast_to(key_bias[:, None, :], (B, S, S))
    mask_full = jnp.concatenate([mask_b] * NH, axis=0)                    # (B*NH, S, S)

    # TODO(synk): with_pool=True also computes tanh(pooler(cls)) but the
    # reference forward never uses pooled_output, so it is skipped here.
    logits_pad = fused_forward(emb2d, mask_full, params)     # (B*S, 128)

    # CLS token (row 0 of each sequence) + real class columns, sliced outside
    # the kernel so the kernel's store stays lane-dense.
    return logits_pad.reshape(B, S, CLS_PAD)[:, 0, :NUM_CLASSES]  # (B, 15)


if __name__ == "__main__":
    key = jax.random.PRNGKey(0)
    pkey, tkey, skey = jax.random.split(key, 3)

    params = init_params(pkey)
    token_ids = jax.random.randint(tkey, (B, S), 0, VOCAB, dtype=jnp.int32)
    segment_ids = jax.random.randint(skey, (B, S), 0, NUM_SEG, dtype=jnp.int32)

    out = forward(params, token_ids, segment_ids)
    jax.block_until_ready(out)
    assert out.shape == (B, NUM_CLASSES) and out.dtype == jnp.float32
    assert bool(jnp.all(jnp.isfinite(out)))
    print("KERNEL_OK")
</pallas_src>

<mosaic_0001>
module attributes {stable_mosaic.version = 11 : i64} {
  func.func @fused_bert_kernel(%arg0: memref<16x64xf32, #tpu.memory_space<vmem>>, %arg1: memref<4x8x8xf32, #tpu.memory_space<vmem>>, %arg2: memref<20x64xf32, #tpu.memory_space<vmem>>, %arg3: memref<2x1x256xf32, #tpu.memory_space<vmem>>, %arg4: memref<2x64x192xf32, #tpu.memory_space<vmem>>, %arg5: memref<2x64x64xf32, #tpu.memory_space<vmem>>, %arg6: memref<2x64x256xf32, #tpu.memory_space<vmem>>, %arg7: memref<2x256x64xf32, #tpu.memory_space<vmem>>, %arg8: memref<64x128xf32, #tpu.memory_space<vmem>>, %arg9: memref<1x128xf32, #tpu.memory_space<vmem>>, %arg10: memref<16x128xf32, #tpu.memory_space<vmem>>) attributes {dimension_semantics = [], scalar_prefetch = 0 : i64, scratch_operands = 0 : i64, tpu.core_type = #tpu.core_type<tc>} {
    %c0 = arith.constant 0 : index
    %c0_0 = arith.constant 0 : index
    %0 = vector.load %arg0[%c0, %c0_0] : memref<16x64xf32, #tpu.memory_space<vmem>>, vector<16x64xf32>
    %c0_1 = arith.constant 0 : index
    %c0_2 = arith.constant 0 : index
    %1 = vector.load %arg2[%c0_1, %c0_2] : memref<20x64xf32, #tpu.memory_space<vmem>>, vector<1x64xf32>
    %c1 = arith.constant 1 : index
    %c0_3 = arith.constant 0 : index
    %2 = vector.load %arg2[%c1, %c0_3] : memref<20x64xf32, #tpu.memory_space<vmem>>, vector<1x64xf32>
    %cst = arith.constant dense<0.000000e+00> : vector<16xf32>
    %3 = vector.multi_reduction <add>, %0, %cst [1] : vector<16x64xf32> to vector<16xf32>
    %4 = vector.shape_cast %3 : vector<16xf32> to vector<16x1xf32>
    %cst_4 = arith.constant 1.562500e-02 : f32
    %5 = vector.broadcast %cst_4 : f32 to vector<16x1xf32>
    %6 = arith.mulf %4, %5 : vector<16x1xf32>
    %7 = arith.mulf %0, %0 : vector<16x64xf32>
    %cst_5 = arith.constant dense<0.000000e+00> : vector<16xf32>
    %8 = vector.multi_reduction <add>, %7, %cst_5 [1] : vector<16x64xf32> to vector<16xf32>
    %9 = vector.shape_cast %8 : vector<16xf32> to vector<16x1xf32>
    %cst_6 = arith.constant 1.562500e-02 : f32
    %10 = vector.broadcast %cst_6 : f32 to vector<16x1xf32>
    %11 = arith.mulf %9, %10 : vector<16x1xf32>
    %12 = arith.mulf %6, %6 : vector<16x1xf32>
    %13 = arith.subf %11, %12 : vector<16x1xf32>
    %cst_7 = arith.constant 0.000000e+00 : f32
    %14 = vector.broadcast %cst_7 : f32 to vector<16x1xf32>
    %15 = arith.maximumf %13, %14 : vector<16x1xf32>
    %16 = vector.broadcast %6 : vector<16x1xf32> to vector<16x64xf32>
    %17 = arith.subf %0, %16 : vector<16x64xf32>
    %cst_8 = arith.constant 9.99999996E-13 : f32
    %18 = vector.broadcast %cst_8 : f32 to vector<16x1xf32>
    %19 = arith.addf %15, %18 : vector<16x1xf32>
    %20 = math.rsqrt %19 : vector<16x1xf32>
    %21 = vector.broadcast %20 : vector<16x1xf32> to vector<16x64xf32>
    %22 = arith.mulf %17, %21 : vector<16x64xf32>
    %23 = vector.broadcast %1 : vector<1x64xf32> to vector<16x64xf32>
    %24 = arith.mulf %22, %23 : vector<16x64xf32>
    %25 = vector.broadcast %2 : vector<1x64xf32> to vector<16x64xf32>
    %26 = arith.addf %24, %25 : vector<16x64xf32>
    %c0_9 = arith.constant 0 : index
    %c0_10 = arith.constant 0 : index
    %c0_11 = arith.constant 0 : index
    %27 = vector.load %arg1[%c0_9, %c0_10, %c0_11] : memref<4x8x8xf32, #tpu.memory_space<vmem>>, vector<4x8x8xf32>
    %c0_12 = arith.constant 0 : index
    %c0_13 = arith.constant 0 : index
    %c0_14 = arith.constant 0 : index
    %28 = vector.load %arg4[%c0_12, %c0_13, %c0_14] : memref<2x64x192xf32, #tpu.memory_space<vmem>>, vector<1x64x192xf32>
    %29 = vector.shape_cast %28 : vector<1x64x192xf32> to vector<64x192xf32>
    %cst_15 = arith.constant dense<0.000000e+00> : vector<16x192xf32>
    %30 = tpu.matmul %26, %29, %cst_15 {dimension_numbers = #tpu.dot_dimension_numbers<[1], [0], [0], [1], [0, 0, 1, 1], [], []>} : vector<16x64xf32>, vector<64x192xf32>, vector<16x192xf32> -> vector<16x192xf32>
    %31 = vector.extract_strided_slice %30 {offsets = [0, 0], sizes = [16, 64], strides = [1, 1]} : vector<16x192xf32> to vector<16x64xf32>
    %c2 = arith.constant 2 : index
    %c0_16 = arith.constant 0 : index
    %32 = vector.load %arg2[%c2, %c0_16] : memref<20x64xf32, #tpu.memory_space<vmem>>, vector<1x64xf32>
    %33 = vector.broadcast %32 : vector<1x64xf32> to vector<16x64xf32>
    %34 = arith.addf %31, %33 : vector<16x64xf32>
    %35 = vector.shape_cast %34 : vector<16x64xf32> to vector<2x8x64xf32>
    %36 = vector.extract_strided_slice %35 {offsets = [0, 0, 0], sizes = [2, 8, 32], strides = [1, 1, 1]} : vector<2x8x64xf32> to vector<2x8x32xf32>
    %37 = vector.extract_strided_slice %35 {offsets = [0, 0, 32], sizes = [2, 8, 32], strides = [1, 1, 1]} : vector<2x8x64xf32> to vector<2x8x32xf32>
    %38 = tpu.concatenate %36, %37 in 0 : vector<2x8x32xf32>, vector<2x8x32xf32> -> vector<4x8x32xf32>
    %39 = vector.extract_strided_slice %30 {offsets = [0, 64], sizes = [16, 64], strides = [1, 1]} : vector<16x192xf32> to vector<16x64xf32>
    %c3 = arith.constant 3 : index
    %c0_17 = arith.constant 0 : index
    %40 = vector.load %arg2[%c3, %c0_17] : memref<20x64xf32, #tpu.memory_space<vmem>>, vector<1x64xf32>
    %41 = vector.broadcast %40 : vector<1x64xf32> to vector<16x64xf32>
    %42 = arith.addf %39, %41 : vector<16x64xf32>
    %43 = vector.shape_cast %42 : vector<16x64xf32> to vector<2x8x64xf32>
    %44 = vector.extract_strided_slice %43 {offsets = [0, 0, 0], sizes = [2, 8, 32], strides = [1, 1, 1]} : vector<2x8x64xf32> to vector<2x8x32xf32>
    %45 = vector.extract_strided_slice %43 {offsets = [0, 0, 32], sizes = [2, 8, 32], strides = [1, 1, 1]} : vector<2x8x64xf32> to vector<2x8x32xf32>
    %46 = tpu.concatenate %44, %45 in 0 : vector<2x8x32xf32>, vector<2x8x32xf32> -> vector<4x8x32xf32>
    %47 = vector.extract_strided_slice %30 {offsets = [0, 128], sizes = [16, 64], strides = [1, 1]} : vector<16x192xf32> to vector<16x64xf32>
    %c4 = arith.constant 4 : index
    %c0_18 = arith.constant 0 : index
    %48 = vector.load %arg2[%c4, %c0_18] : memref<20x64xf32, #tpu.memory_space<vmem>>, vector<1x64xf32>
    %49 = vector.broadcast %48 : vector<1x64xf32> to vector<16x64xf32>
    %50 = arith.addf %47, %49 : vector<16x64xf32>
    %51 = vector.shape_cast %50 : vector<16x64xf32> to vector<2x8x64xf32>
    %52 = vector.extract_strided_slice %51 {offsets = [0, 0, 0], sizes = [2, 8, 32], strides = [1, 1, 1]} : vector<2x8x64xf32> to vector<2x8x32xf32>
    %53 = vector.extract_strided_slice %51 {offsets = [0, 0, 32], sizes = [2, 8, 32], strides = [1, 1, 1]} : vector<2x8x64xf32> to vector<2x8x32xf32>
    %54 = tpu.concatenate %52, %53 in 0 : vector<2x8x32xf32>, vector<2x8x32xf32> -> vector<4x8x32xf32>
    "tpu.trace_start"() <{level = 10 : i32, message = "bqd,bkd->bqk"}> : () -> ()
    %cst_19 = arith.constant dense<0.000000e+00> : vector<4x8x8xf32>
    %55 = tpu.matmul %38, %46, %cst_19 {dimension_numbers = #tpu.dot_dimension_numbers<[2], [2], [1], [1], [0, 0, 0, 1, 1, 1], [0], [0]>} : vector<4x8x32xf32>, vector<4x8x32xf32>, vector<4x8x8xf32> -> vector<4x8x8xf32>
    "tpu.trace_stop"() : () -> ()
    %cst_20 = arith.constant 0.176776692 : f32
    %56 = vector.broadcast %cst_20 : f32 to vector<4x8x8xf32>
    %57 = arith.mulf %55, %56 : vector<4x8x8xf32>
    %58 = arith.addf %57, %27 : vector<4x8x8xf32>
    %cst_21 = arith.constant dense<0xFF800000> : vector<4x8xf32>
    %59 = vector.multi_reduction <maximumf>, %58, %cst_21 [2] : vector<4x8x8xf32> to vector<4x8xf32>
    %60 = vector.shape_cast %59 : vector<4x8xf32> to vector<4x8x1xf32>
    %61 = vector.broadcast %60 : vector<4x8x1xf32> to vector<4x8x8xf32>
    %62 = arith.subf %58, %61 : vector<4x8x8xf32>
    %63 = math.exp %62 : vector<4x8x8xf32>
    %cst_22 = arith.constant dense<0.000000e+00> : vector<4x8xf32>
    %64 = vector.multi_reduction <add>, %63, %cst_22 [2] : vector<4x8x8xf32> to vector<4x8xf32>
    %65 = vector.shape_cast %64 : vector<4x8xf32> to vector<4x8x1xf32>
    %66 = tpu.reciprocal %65 {approx = true} : vector<4x8x1xf32> -> vector<4x8x1xf32>
    %67 = vector.broadcast %66 : vector<4x8x1xf32> to vector<4x8x8xf32>
    %68 = arith.mulf %63, %67 : vector<4x8x8xf32>
    "tpu.trace_start"() <{level = 10 : i32, message = "bqk,bkd->bqd"}> : () -> ()
    %cst_23 = arith.constant dense<0.000000e+00> : vector<4x8x32xf32>
    %69 = tpu.matmul %68, %54, %cst_23 {dimension_numbers = #tpu.dot_dimension_numbers<[2], [1], [1], [2], [0, 0, 0, 1, 1, 2], [0], [0]>} : vector<4x8x8xf32>, vector<4x8x32xf32>, vector<4x8x32xf32> -> vector<4x8x32xf32>
    "tpu.trace_stop"() : () -> ()
    %70 = vector.extract_strided_slice %69 {offsets = [0, 0, 0], sizes = [2, 8, 32], strides = [1, 1, 1]} : vector<4x8x32xf32> to vector<2x8x32xf32>
    %71 = vector.extract_strided_slice %69 {offsets = [2, 0, 0], sizes = [2, 8, 32], strides = [1, 1, 1]} : vector<4x8x32xf32> to vector<2x8x32xf32>
    %72 = tpu.concatenate %70, %71 in 2 : vector<2x8x32xf32>, vector<2x8x32xf32> -> vector<2x8x64xf32>
    %73 = vector.shape_cast %72 : vector<2x8x64xf32> to vector<16x64xf32>
    %c0_24 = arith.constant 0 : index
    %c0_25 = arith.constant 0 : index
    %c0_26 = arith.constant 0 : index
    %74 = vector.load %arg5[%c0_24, %c0_25, %c0_26] : memref<2x64x64xf32, #tpu.memory_space<vmem>>, vector<1x64x64xf32>
    %75 = vector.shape_cast %74 : vector<1x64x64xf32> to vector<64x64xf32>
    %cst_27 = arith.constant dense<0.000000e+00> : vector<16x64xf32>
    %76 = tpu.matmul %73, %75, %cst_27 {dimension_numbers = #tpu.dot_dimension_numbers<[1], [0], [0], [1], [0, 0, 1, 1], [], []>} : vector<16x64xf32>, vector<64x64xf32>, vector<16x64xf32> -> vector<16x64xf32>
    %c5 = arith.constant 5 : index
    %c0_28 = arith.constant 0 : index
    %77 = vector.load %arg2[%c5, %c0_28] : memref<20x64xf32, #tpu.memory_space<vmem>>, vector<1x64xf32>
    %78 = vector.broadcast %77 : vector<1x64xf32> to vector<16x64xf32>
    %79 = arith.addf %76, %78 : vector<16x64xf32>
    %80 = arith.addf %26, %79 : vector<16x64xf32>
    %c6 = arith.constant 6 : index
    %c0_29 = arith.constant 0 : index
    %81 = vector.load %arg2[%c6, %c0_29] : memref<20x64xf32, #tpu.memory_space<vmem>>, vector<1x64xf32>
    %c7 = arith.constant 7 : index
    %c0_30 = arith.constant 0 : index
    %82 = vector.load %arg2[%c7, %c0_30] : memref<20x64xf32, #tpu.memory_space<vmem>>, vector<1x64xf32>
    %cst_31 = arith.constant dense<0.000000e+00> : vector<16xf32>
    %83 = vector.multi_reduction <add>, %80, %cst_31 [1] : vector<16x64xf32> to vector<16xf32>
    %84 = vector.shape_cast %83 : vector<16xf32> to vector<16x1xf32>
    %cst_32 = arith.constant 1.562500e-02 : f32
    %85 = vector.broadcast %cst_32 : f32 to vector<16x1xf32>
    %86 = arith.mulf %84, %85 : vector<16x1xf32>
    %87 = arith.mulf %80, %80 : vector<16x64xf32>
    %cst_33 = arith.constant dense<0.000000e+00> : vector<16xf32>
    %88 = vector.multi_reduction <add>, %87, %cst_33 [1] : vector<16x64xf32> to vector<16xf32>
    %89 = vector.shape_cast %88 : vector<16xf32> to vector<16x1xf32>
    %cst_34 = arith.constant 1.562500e-02 : f32
    %90 = vector.broadcast %cst_34 : f32 to vector<16x1xf32>
    %91 = arith.mulf %89, %90 : vector<16x1xf32>
    %92 = arith.mulf %86, %86 : vector<16x1xf32>
    %93 = arith.subf %91, %92 : vector<16x1xf32>
    %cst_35 = arith.constant 0.000000e+00 : f32
    %94 = vector.broadcast %cst_35 : f32 to vector<16x1xf32>
    %95 = arith.maximumf %93, %94 : vector<16x1xf32>
    %96 = vector.broadcast %86 : vector<16x1xf32> to vector<16x64xf32>
    %97 = arith.subf %80, %96 : vector<16x64xf32>
    %cst_36 = arith.constant 9.99999996E-13 : f32
    %98 = vector.broadcast %cst_36 : f32 to vector<16x1xf32>
    %99 = arith.addf %95, %98 : vector<16x1xf32>
    %100 = math.rsqrt %99 : vector<16x1xf32>
    %101 = vector.broadcast %100 : vector<16x1xf32> to vector<16x64xf32>
    %102 = arith.mulf %97, %101 : vector<16x64xf32>
    %103 = vector.broadcast %81 : vector<1x64xf32> to vector<16x64xf32>
    %104 = arith.mulf %102, %103 : vector<16x64xf32>
    %105 = vector.broadcast %82 : vector<1x64xf32> to vector<16x64xf32>
    %106 = arith.addf %104, %105 : vector<16x64xf32>
    %c0_37 = arith.constant 0 : index
    %c0_38 = arith.constant 0 : index
    %c0_39 = arith.constant 0 : index
    %107 = vector.load %arg6[%c0_37, %c0_38, %c0_39] : memref<2x64x256xf32, #tpu.memory_space<vmem>>, vector<1x64x256xf32>
    %108 = vector.shape_cast %107 : vector<1x64x256xf32> to vector<64x256xf32>
    %cst_40 = arith.constant dense<0.000000e+00> : vector<16x256xf32>
    %109 = tpu.matmul %106, %108, %cst_40 {dimension_numbers = #tpu.dot_dimension_numbers<[1], [0], [0], [1], [0, 0, 1, 1], [], []>} : vector<16x64xf32>, vector<64x256xf32>, vector<16x256xf32> -> vector<16x256xf32>
    %c0_41 = arith.constant 0 : index
    %c0_42 = arith.constant 0 : index
    %c0_43 = arith.constant 0 : index
    %110 = vector.load %arg3[%c0_41, %c0_42, %c0_43] : memref<2x1x256xf32, #tpu.memory_space<vmem>>, vector<1x1x256xf32>
    %111 = vector.shape_cast %110 : vector<1x1x256xf32> to vector<1x256xf32>
    %112 = vector.broadcast %111 : vector<1x256xf32> to vector<16x256xf32>
    %113 = arith.addf %109, %112 : vector<16x256xf32>
    %cst_44 = arith.constant 5.000000e-01 : f32
    %114 = vector.broadcast %cst_44 : f32 to vector<16x256xf32>
    %115 = arith.mulf %114, %113 : vector<16x256xf32>
    %cst_45 = arith.constant 0.707106769 : f32
    %116 = vector.broadcast %cst_45 : f32 to vector<16x256xf32>
    %117 = arith.mulf %113, %116 : vector<16x256xf32>
    %cst_46 = arith.constant 0.000000e+00 : f32
    %118 = vector.broadcast %cst_46 : f32 to vector<16x256xf32>
    %119 = arith.cmpf oge, %117, %118 : vector<16x256xf32>
    %cst_47 = arith.constant 1.000000e+00 : f32
    %cst_48 = arith.constant -1.000000e+00 : f32
    %120 = vector.broadcast %cst_47 : f32 to vector<16x256xf32>
    %121 = vector.broadcast %cst_48 : f32 to vector<16x256xf32>
    %122 = arith.select %119, %120, %121 : vector<16x256xi1>, vector<16x256xf32>
    %123 = math.absf %117 : vector<16x256xf32>
    %cst_49 = arith.constant 0.327591091 : f32
    %124 = vector.broadcast %cst_49 : f32 to vector<16x256xf32>
    %125 = arith.mulf %124, %123 : vector<16x256xf32>
    %cst_50 = arith.constant 1.000000e+00 : f32
    %126 = vector.broadcast %cst_50 : f32 to vector<16x256xf32>
    %127 = arith.addf %126, %125 : vector<16x256xf32>
    %cst_51 = arith.constant 1.000000e+00 : f32
    %128 = vector.broadcast %cst_51 : f32 to vector<16x256xf32>
    %129 = arith.divf %128, %127 : vector<16x256xf32>
    %cst_52 = arith.constant 1.06140542 : f32
    %130 = vector.broadcast %cst_52 : f32 to vector<16x256xf32>
    %131 = arith.mulf %130, %129 : vector<16x256xf32>
    %cst_53 = arith.constant -1.45315206 : f32
    %132 = vector.broadcast %cst_53 : f32 to vector<16x256xf32>
    %133 = arith.addf %131, %132 : vector<16x256xf32>
    %134 = arith.mulf %133, %129 : vector<16x256xf32>
    %cst_54 = arith.constant 1.42141378 : f32
    %135 = vector.broadcast %cst_54 : f32 to vector<16x256xf32>
    %136 = arith.addf %134, %135 : vector<16x256xf32>
    %137 = arith.mulf %136, %129 : vector<16x256xf32>
    %cst_55 = arith.constant -0.284496725 : f32
    %138 = vector.broadcast %cst_55 : f32 to vector<16x256xf32>
    %139 = arith.addf %137, %138 : vector<16x256xf32>
    %140 = arith.mulf %139, %129 : vector<16x256xf32>
    %cst_56 = arith.constant 0.254829586 : f32
    %141 = vector.broadcast %cst_56 : f32 to vector<16x256xf32>
    %142 = arith.addf %140, %141 : vector<16x256xf32>
    %143 = arith.mulf %142, %129 : vector<16x256xf32>
    %cst_57 = arith.constant 0.000000e+00 : f32
    %144 = vector.broadcast %cst_57 : f32 to vector<16x256xf32>
    %145 = arith.subf %144, %123 : vector<16x256xf32>
    %146 = arith.mulf %145, %123 : vector<16x256xf32>
    %147 = math.exp %146 : vector<16x256xf32>
    %148 = arith.mulf %143, %147 : vector<16x256xf32>
    %cst_58 = arith.constant 1.000000e+00 : f32
    %149 = vector.broadcast %cst_58 : f32 to vector<16x256xf32>
    %150 = arith.subf %149, %148 : vector<16x256xf32>
    %151 = arith.mulf %122, %150 : vector<16x256xf32>
    %cst_59 = arith.constant 1.000000e+00 : f32
    %152 = vector.broadcast %cst_59 : f32 to vector<16x256xf32>
    %153 = arith.addf %152, %151 : vector<16x256xf32>
    %154 = arith.mulf %115, %153 : vector<16x256xf32>
    %c0_60 = arith.constant 0 : index
    %c0_61 = arith.constant 0 : index
    %c0_62 = arith.constant 0 : index
    %155 = vector.load %arg7[%c0_60, %c0_61, %c0_62] : memref<2x256x64xf32, #tpu.memory_space<vmem>>, vector<1x256x64xf32>
    %156 = vector.shape_cast %155 : vector<1x256x64xf32> to vector<256x64xf32>
    %cst_63 = arith.constant dense<0.000000e+00> : vector<16x64xf32>
    %157 = tpu.matmul %154, %156, %cst_63 {dimension_numbers = #tpu.dot_dimension_numbers<[1], [0], [0], [1], [0, 0, 1, 1], [], []>} : vector<16x256xf32>, vector<256x64xf32>, vector<16x64xf32> -> vector<16x64xf32>
    %c8 = arith.constant 8 : index
    %c0_64 = arith.constant 0 : index
    %158 = vector.load %arg2[%c8, %c0_64] : memref<20x64xf32, #tpu.memory_space<vmem>>, vector<1x64xf32>
    %159 = vector.broadcast %158 : vector<1x64xf32> to vector<16x64xf32>
    %160 = arith.addf %157, %159 : vector<16x64xf32>
    %161 = arith.addf %106, %160 : vector<16x64xf32>
    %c9 = arith.constant 9 : index
    %c0_65 = arith.constant 0 : index
    %162 = vector.load %arg2[%c9, %c0_65] : memref<20x64xf32, #tpu.memory_space<vmem>>, vector<1x64xf32>
    %c10 = arith.constant 10 : index
    %c0_66 = arith.constant 0 : index
    %163 = vector.load %arg2[%c10, %c0_66] : memref<20x64xf32, #tpu.memory_space<vmem>>, vector<1x64xf32>
    %cst_67 = arith.constant dense<0.000000e+00> : vector<16xf32>
    %164 = vector.multi_reduction <add>, %161, %cst_67 [1] : vector<16x64xf32> to vector<16xf32>
    %165 = vector.shape_cast %164 : vector<16xf32> to vector<16x1xf32>
    %cst_68 = arith.constant 1.562500e-02 : f32
    %166 = vector.broadcast %cst_68 : f32 to vector<16x1xf32>
    %167 = arith.mulf %165, %166 : vector<16x1xf32>
    %168 = arith.mulf %161, %161 : vector<16x64xf32>
    %cst_69 = arith.constant dense<0.000000e+00> : vector<16xf32>
    %169 = vector.multi_reduction <add>, %168, %cst_69 [1] : vector<16x64xf32> to vector<16xf32>
    %170 = vector.shape_cast %169 : vector<16xf32> to vector<16x1xf32>
    %cst_70 = arith.constant 1.562500e-02 : f32
    %171 = vector.broadcast %cst_70 : f32 to vector<16x1xf32>
    %172 = arith.mulf %170, %171 : vector<16x1xf32>
    %173 = arith.mulf %167, %167 : vector<16x1xf32>
    %174 = arith.subf %172, %173 : vector<16x1xf32>
    %cst_71 = arith.constant 0.000000e+00 : f32
    %175 = vector.broadcast %cst_71 : f32 to vector<16x1xf32>
    %176 = arith.maximumf %174, %175 : vector<16x1xf32>
    %177 = vector.broadcast %167 : vector<16x1xf32> to vector<16x64xf32>
    %178 = arith.subf %161, %177 : vector<16x64xf32>
    %cst_72 = arith.constant 9.99999996E-13 : f32
    %179 = vector.broadcast %cst_72 : f32 to vector<16x1xf32>
    %180 = arith.addf %176, %179 : vector<16x1xf32>
    %181 = math.rsqrt %180 : vector<16x1xf32>
    %182 = vector.broadcast %181 : vector<16x1xf32> to vector<16x64xf32>
    %183 = arith.mulf %178, %182 : vector<16x64xf32>
    %184 = vector.broadcast %162 : vector<1x64xf32> to vector<16x64xf32>
    %185 = arith.mulf %183, %184 : vector<16x64xf32>
    %186 = vector.broadcast %163 : vector<1x64xf32> to vector<16x64xf32>
    %187 = arith.addf %185, %186 : vector<16x64xf32>
    %c1_73 = arith.constant 1 : index
    %c0_74 = arith.constant 0 : index
    %c0_75 = arith.constant 0 : index
    %188 = vector.load %arg4[%c1_73, %c0_74, %c0_75] : memref<2x64x192xf32, #tpu.memory_space<vmem>>, vector<1x64x192xf32>
    %189 = vector.shape_cast %188 : vector<1x64x192xf32> to vector<64x192xf32>
    %cst_76 = arith.constant dense<0.000000e+00> : vector<16x192xf32>
    %190 = tpu.matmul %187, %189, %cst_76 {dimension_numbers = #tpu.dot_dimension_numbers<[1], [0], [0], [1], [0, 0, 1, 1], [], []>} : vector<16x64xf32>, vector<64x192xf32>, vector<16x192xf32> -> vector<16x192xf32>
    %191 = vector.extract_strided_slice %190 {offsets = [0, 0], sizes = [16, 64], strides = [1, 1]} : vector<16x192xf32> to vector<16x64xf32>
    %c11 = arith.constant 11 : index
    %c0_77 = arith.constant 0 : index
    %192 = vector.load %arg2[%c11, %c0_77] : memref<20x64xf32, #tpu.memory_space<vmem>>, vector<1x64xf32>
    %193 = vector.broadcast %192 : vector<1x64xf32> to vector<16x64xf32>
    %194 = arith.addf %191, %193 : vector<16x64xf32>
    %195 = vector.shape_cast %194 : vector<16x64xf32> to vector<2x8x64xf32>
    %196 = vector.extract_strided_slice %195 {offsets = [0, 0, 0], sizes = [2, 8, 32], strides = [1, 1, 1]} : vector<2x8x64xf32> to vector<2x8x32xf32>
    %197 = vector.extract_strided_slice %195 {offsets = [0, 0, 32], sizes = [2, 8, 32], strides = [1, 1, 1]} : vector<2x8x64xf32> to vector<2x8x32xf32>
    %198 = tpu.concatenate %196, %197 in 0 : vector<2x8x32xf32>, vector<2x8x32xf32> -> vector<4x8x32xf32>
    %199 = vector.extract_strided_slice %190 {offsets = [0, 64], sizes = [16, 64], strides = [1, 1]} : vector<16x192xf32> to vector<16x64xf32>
    %c12 = arith.constant 12 : index
    %c0_78 = arith.constant 0 : index
    %200 = vector.load %arg2[%c12, %c0_78] : memref<20x64xf32, #tpu.memory_space<vmem>>, vector<1x64xf32>
    %201 = vector.broadcast %200 : vector<1x64xf32> to vector<16x64xf32>
    %202 = arith.addf %199, %201 : vector<16x64xf32>
    %203 = vector.shape_cast %202 : vector<16x64xf32> to vector<2x8x64xf32>
    %204 = vector.extract_strided_slice %203 {offsets = [0, 0, 0], sizes = [2, 8, 32], strides = [1, 1, 1]} : vector<2x8x64xf32> to vector<2x8x32xf32>
    %205 = vector.extract_strided_slice %203 {offsets = [0, 0, 32], sizes = [2, 8, 32], strides = [1, 1, 1]} : vector<2x8x64xf32> to vector<2x8x32xf32>
    %206 = tpu.concatenate %204, %205 in 0 : vector<2x8x32xf32>, vector<2x8x32xf32> -> vector<4x8x32xf32>
    %207 = vector.extract_strided_slice %190 {offsets = [0, 128], sizes = [16, 64], strides = [1, 1]} : vector<16x192xf32> to vector<16x64xf32>
    %c13 = arith.constant 13 : index
    %c0_79 = arith.constant 0 : index
    %208 = vector.load %arg2[%c13, %c0_79] : memref<20x64xf32, #tpu.memory_space<vmem>>, vector<1x64xf32>
    %209 = vector.broadcast %208 : vector<1x64xf32> to vector<16x64xf32>
    %210 = arith.addf %207, %209 : vector<16x64xf32>
    %211 = vector.shape_cast %210 : vector<16x64xf32> to vector<2x8x64xf32>
    %212 = vector.extract_strided_slice %211 {offsets = [0, 0, 0], sizes = [2, 8, 32], strides = [1, 1, 1]} : vector<2x8x64xf32> to vector<2x8x32xf32>
    %213 = vector.extract_strided_slice %211 {offsets = [0, 0, 32], sizes = [2, 8, 32], strides = [1, 1, 1]} : vector<2x8x64xf32> to vector<2x8x32xf32>
    %214 = tpu.concatenate %212, %213 in 0 : vector<2x8x32xf32>, vector<2x8x32xf32> -> vector<4x8x32xf32>
    "tpu.trace_start"() <{level = 10 : i32, message = "bqd,bkd->bqk"}> : () -> ()
    %cst_80 = arith.constant dense<0.000000e+00> : vector<4x8x8xf32>
    %215 = tpu.matmul %198, %206, %cst_80 {dimension_numbers = #tpu.dot_dimension_numbers<[2], [2], [1], [1], [0, 0, 0, 1, 1, 1], [0], [0]>} : vector<4x8x32xf32>, vector<4x8x32xf32>, vector<4x8x8xf32> -> vector<4x8x8xf32>
    "tpu.trace_stop"() : () -> ()
    %cst_81 = arith.constant 0.176776692 : f32
    %216 = vector.broadcast %cst_81 : f32 to vector<4x8x8xf32>
    %217 = arith.mulf %215, %216 : vector<4x8x8xf32>
    %218 = arith.addf %217, %27 : vector<4x8x8xf32>
    %cst_82 = arith.constant dense<0xFF800000> : vector<4x8xf32>
    %219 = vector.multi_reduction <maximumf>, %218, %cst_82 [2] : vector<4x8x8xf32> to vector<4x8xf32>
    %220 = vector.shape_cast %219 : vector<4x8xf32> to vector<4x8x1xf32>
    %221 = vector.broadcast %220 : vector<4x8x1xf32> to vector<4x8x8xf32>
    %222 = arith.subf %218, %221 : vector<4x8x8xf32>
    %223 = math.exp %222 : vector<4x8x8xf32>
    %cst_83 = arith.constant dense<0.000000e+00> : vector<4x8xf32>
    %224 = vector.multi_reduction <add>, %223, %cst_83 [2] : vector<4x8x8xf32> to vector<4x8xf32>
    %225 = vector.shape_cast %224 : vector<4x8xf32> to vector<4x8x1xf32>
    %226 = tpu.reciprocal %225 {approx = true} : vector<4x8x1xf32> -> vector<4x8x1xf32>
    %227 = vector.broadcast %226 : vector<4x8x1xf32> to vector<4x8x8xf32>
    %228 = arith.mulf %223, %227 : vector<4x8x8xf32>
    "tpu.trace_start"() <{level = 10 : i32, message = "bqk,bkd->bqd"}> : () -> ()
    %cst_84 = arith.constant dense<0.000000e+00> : vector<4x8x32xf32>
    %229 = tpu.matmul %228, %214, %cst_84 {dimension_numbers = #tpu.dot_dimension_numbers<[2], [1], [1], [2], [0, 0, 0, 1, 1, 2], [0], [0]>} : vector<4x8x8xf32>, vector<4x8x32xf32>, vector<4x8x32xf32> -> vector<4x8x32xf32>
    "tpu.trace_stop"() : () -> ()
    %230 = vector.extract_strided_slice %229 {offsets = [0, 0, 0], sizes = [2, 8, 32], strides = [1, 1, 1]} : vector<4x8x32xf32> to vector<2x8x32xf32>
    %231 = vector.extract_strided_slice %229 {offsets = [2, 0, 0], sizes = [2, 8, 32], strides = [1, 1, 1]} : vector<4x8x32xf32> to vector<2x8x32xf32>
    %232 = tpu.concatenate %230, %231 in 2 : vector<2x8x32xf32>, vector<2x8x32xf32> -> vector<2x8x64xf32>
    %233 = vector.shape_cast %232 : vector<2x8x64xf32> to vector<16x64xf32>
    %c1_85 = arith.constant 1 : index
    %c0_86 = arith.constant 0 : index
    %c0_87 = arith.constant 0 : index
    %234 = vector.load %arg5[%c1_85, %c0_86, %c0_87] : memref<2x64x64xf32, #tpu.memory_space<vmem>>, vector<1x64x64xf32>
    %235 = vector.shape_cast %234 : vector<1x64x64xf32> to vector<64x64xf32>
    %cst_88 = arith.constant dense<0.000000e+00> : vector<16x64xf32>
    %236 = tpu.matmul %233, %235, %cst_88 {dimension_numbers = #tpu.dot_dimension_numbers<[1], [0], [0], [1], [0, 0, 1, 1], [], []>} : vector<16x64xf32>, vector<64x64xf32>, vector<16x64xf32> -> vector<16x64xf32>
    %c14 = arith.constant 14 : index
    %c0_89 = arith.constant 0 : index
    %237 = vector.load %arg2[%c14, %c0_89] : memref<20x64xf32, #tpu.memory_space<vmem>>, vector<1x64xf32>
    %238 = vector.broadcast %237 : vector<1x64xf32> to vector<16x64xf32>
    %239 = arith.addf %236, %238 : vector<16x64xf32>
    %240 = arith.addf %187, %239 : vector<16x64xf32>
    %c15 = arith.constant 15 : index
    %c0_90 = arith.constant 0 : index
    %241 = vector.load %arg2[%c15, %c0_90] : memref<20x64xf32, #tpu.memory_space<vmem>>, vector<1x64xf32>
    %c16 = arith.constant 16 : index
    %c0_91 = arith.constant 0 : index
    %242 = vector.load %arg2[%c16, %c0_91] : memref<20x64xf32, #tpu.memory_space<vmem>>, vector<1x64xf32>
    %cst_92 = arith.constant dense<0.000000e+00> : vector<16xf32>
    %243 = vector.multi_reduction <add>, %240, %cst_92 [1] : vector<16x64xf32> to vector<16xf32>
    %244 = vector.shape_cast %243 : vector<16xf32> to vector<16x1xf32>
    %cst_93 = arith.constant 1.562500e-02 : f32
    %245 = vector.broadcast %cst_93 : f32 to vector<16x1xf32>
    %246 = arith.mulf %244, %245 : vector<16x1xf32>
    %247 = arith.mulf %240, %240 : vector<16x64xf32>
    %cst_94 = arith.constant dense<0.000000e+00> : vector<16xf32>
    %248 = vector.multi_reduction <add>, %247, %cst_94 [1] : vector<16x64xf32> to vector<16xf32>
    %249 = vector.shape_cast %248 : vector<16xf32> to vector<16x1xf32>
    %cst_95 = arith.constant 1.562500e-02 : f32
    %250 = vector.broadcast %cst_95 : f32 to vector<16x1xf32>
    %251 = arith.mulf %249, %250 : vector<16x1xf32>
    %252 = arith.mulf %246, %246 : vector<16x1xf32>
    %253 = arith.subf %251, %252 : vector<16x1xf32>
    %cst_96 = arith.constant 0.000000e+00 : f32
    %254 = vector.broadcast %cst_96 : f32 to vector<16x1xf32>
    %255 = arith.maximumf %253, %254 : vector<16x1xf32>
    %256 = vector.broadcast %246 : vector<16x1xf32> to vector<16x64xf32>
    %257 = arith.subf %240, %256 : vector<16x64xf32>
    %cst_97 = arith.constant 9.99999996E-13 : f32
    %258 = vector.broadcast %cst_97 : f32 to vector<16x1xf32>
    %259 = arith.addf %255, %258 : vector<16x1xf32>
    %260 = math.rsqrt %259 : vector<16x1xf32>
    %261 = vector.broadcast %260 : vector<16x1xf32> to vector<16x64xf32>
    %262 = arith.mulf %257, %261 : vector<16x64xf32>
    %263 = vector.broadcast %241 : vector<1x64xf32> to vector<16x64xf32>
    %264 = arith.mulf %262, %263 : vector<16x64xf32>
    %265 = vector.broadcast %242 : vector<1x64xf32> to vector<16x64xf32>
    %266 = arith.addf %264, %265 : vector<16x64xf32>
    %c1_98 = arith.constant 1 : index
    %c0_99 = arith.constant 0 : index
    %c0_100 = arith.constant 0 : index
    %267 = vector.load %arg6[%c1_98, %c0_99, %c0_100] : memref<2x64x256xf32, #tpu.memory_space<vmem>>, vector<1x64x256xf32>
    %268 = vector.shape_cast %267 : vector<1x64x256xf32> to vector<64x256xf32>
    %cst_101 = arith.constant dense<0.000000e+00> : vector<16x256xf32>
    %269 = tpu.matmul %266, %268, %cst_101 {dimension_numbers = #tpu.dot_dimension_numbers<[1], [0], [0], [1], [0, 0, 1, 1], [], []>} : vector<16x64xf32>, vector<64x256xf32>, vector<16x256xf32> -> vector<16x256xf32>
    %c1_102 = arith.constant 1 : index
    %c0_103 = arith.constant 0 : index
    %c0_104 = arith.constant 0 : index
    %270 = vector.load %arg3[%c1_102, %c0_103, %c0_104] : memref<2x1x256xf32, #tpu.memory_space<vmem>>, vector<1x1x256xf32>
    %271 = vector.shape_cast %270 : vector<1x1x256xf32> to vector<1x256xf32>
    %272 = vector.broadcast %271 : vector<1x256xf32> to vector<16x256xf32>
    %273 = arith.addf %269, %272 : vector<16x256xf32>
    %cst_105 = arith.constant 5.000000e-01 : f32
    %274 = vector.broadcast %cst_105 : f32 to vector<16x256xf32>
    %275 = arith.mulf %274, %273 : vector<16x256xf32>
    %cst_106 = arith.constant 0.707106769 : f32
    %276 = vector.broadcast %cst_106 : f32 to vector<16x256xf32>
    %277 = arith.mulf %273, %276 : vector<16x256xf32>
    %cst_107 = arith.constant 0.000000e+00 : f32
    %278 = vector.broadcast %cst_107 : f32 to vector<16x256xf32>
    %279 = arith.cmpf oge, %277, %278 : vector<16x256xf32>
    %cst_108 = arith.constant 1.000000e+00 : f32
    %cst_109 = arith.constant -1.000000e+00 : f32
    %280 = vector.broadcast %cst_108 : f32 to vector<16x256xf32>
    %281 = vector.broadcast %cst_109 : f32 to vector<16x256xf32>
    %282 = arith.select %279, %280, %281 : vector<16x256xi1>, vector<16x256xf32>
    %283 = math.absf %277 : vector<16x256xf32>
    %cst_110 = arith.constant 0.327591091 : f32
    %284 = vector.broadcast %cst_110 : f32 to vector<16x256xf32>
    %285 = arith.mulf %284, %283 : vector<16x256xf32>
    %cst_111 = arith.constant 1.000000e+00 : f32
    %286 = vector.broadcast %cst_111 : f32 to vector<16x256xf32>
    %287 = arith.addf %286, %285 : vector<16x256xf32>
    %cst_112 = arith.constant 1.000000e+00 : f32
    %288 = vector.broadcast %cst_112 : f32 to vector<16x256xf32>
    %289 = arith.divf %288, %287 : vector<16x256xf32>
    %cst_113 = arith.constant 1.06140542 : f32
    %290 = vector.broadcast %cst_113 : f32 to vector<16x256xf32>
    %291 = arith.mulf %290, %289 : vector<16x256xf32>
    %cst_114 = arith.constant -1.45315206 : f32
    %292 = vector.broadcast %cst_114 : f32 to vector<16x256xf32>
    %293 = arith.addf %291, %292 : vector<16x256xf32>
    %294 = arith.mulf %293, %289 : vector<16x256xf32>
    %cst_115 = arith.constant 1.42141378 : f32
    %295 = vector.broadcast %cst_115 : f32 to vector<16x256xf32>
    %296 = arith.addf %294, %295 : vector<16x256xf32>
    %297 = arith.mulf %296, %289 : vector<16x256xf32>
    %cst_116 = arith.constant -0.284496725 : f32
    %298 = vector.broadcast %cst_116 : f32 to vector<16x256xf32>
    %299 = arith.addf %297, %298 : vector<16x256xf32>
    %300 = arith.mulf %299, %289 : vector<16x256xf32>
    %cst_117 = arith.constant 0.254829586 : f32
    %301 = vector.broadcast %cst_117 : f32 to vector<16x256xf32>
    %302 = arith.addf %300, %301 : vector<16x256xf32>
    %303 = arith.mulf %302, %289 : vector<16x256xf32>
    %cst_118 = arith.constant 0.000000e+00 : f32
    %304 = vector.broadcast %cst_118 : f32 to vector<16x256xf32>
    %305 = arith.subf %304, %283 : vector<16x256xf32>
    %306 = arith.mulf %305, %283 : vector<16x256xf32>
    %307 = math.exp %306 : vector<16x256xf32>
    %308 = arith.mulf %303, %307 : vector<16x256xf32>
    %cst_119 = arith.constant 1.000000e+00 : f32
    %309 = vector.broadcast %cst_119 : f32 to vector<16x256xf32>
    %310 = arith.subf %309, %308 : vector<16x256xf32>
    %311 = arith.mulf %282, %310 : vector<16x256xf32>
    %cst_120 = arith.constant 1.000000e+00 : f32
    %312 = vector.broadcast %cst_120 : f32 to vector<16x256xf32>
    %313 = arith.addf %312, %311 : vector<16x256xf32>
    %314 = arith.mulf %275, %313 : vector<16x256xf32>
    %c1_121 = arith.constant 1 : index
    %c0_122 = arith.constant 0 : index
    %c0_123 = arith.constant 0 : index
    %315 = vector.load %arg7[%c1_121, %c0_122, %c0_123] : memref<2x256x64xf32, #tpu.memory_space<vmem>>, vector<1x256x64xf32>
    %316 = vector.shape_cast %315 : vector<1x256x64xf32> to vector<256x64xf32>
    %cst_124 = arith.constant dense<0.000000e+00> : vector<16x64xf32>
    %317 = tpu.matmul %314, %316, %cst_124 {dimension_numbers = #tpu.dot_dimension_numbers<[1], [0], [0], [1], [0, 0, 1, 1], [], []>} : vector<16x256xf32>, vector<256x64xf32>, vector<16x64xf32> -> vector<16x64xf32>
    %c17 = arith.constant 17 : index
    %c0_125 = arith.constant 0 : index
    %318 = vector.load %arg2[%c17, %c0_125] : memref<20x64xf32, #tpu.memory_space<vmem>>, vector<1x64xf32>
    %319 = vector.broadcast %318 : vector<1x64xf32> to vector<16x64xf32>
    %320 = arith.addf %317, %319 : vector<16x64xf32>
    %321 = arith.addf %266, %320 : vector<16x64xf32>
    %c18 = arith.constant 18 : index
    %c0_126 = arith.constant 0 : index
    %322 = vector.load %arg2[%c18, %c0_126] : memref<20x64xf32, #tpu.memory_space<vmem>>, vector<1x64xf32>
    %c19 = arith.constant 19 : index
    %c0_127 = arith.constant 0 : index
    %323 = vector.load %arg2[%c19, %c0_127] : memref<20x64xf32, #tpu.memory_space<vmem>>, vector<1x64xf32>
    %cst_128 = arith.constant dense<0.000000e+00> : vector<16xf32>
    %324 = vector.multi_reduction <add>, %321, %cst_128 [1] : vector<16x64xf32> to vector<16xf32>
    %325 = vector.shape_cast %324 : vector<16xf32> to vector<16x1xf32>
    %cst_129 = arith.constant 1.562500e-02 : f32
    %326 = vector.broadcast %cst_129 : f32 to vector<16x1xf32>
    %327 = arith.mulf %325, %326 : vector<16x1xf32>
    %328 = arith.mulf %321, %321 : vector<16x64xf32>
    %cst_130 = arith.constant dense<0.000000e+00> : vector<16xf32>
    %329 = vector.multi_reduction <add>, %328, %cst_130 [1] : vector<16x64xf32> to vector<16xf32>
    %330 = vector.shape_cast %329 : vector<16xf32> to vector<16x1xf32>
    %cst_131 = arith.constant 1.562500e-02 : f32
    %331 = vector.broadcast %cst_131 : f32 to vector<16x1xf32>
    %332 = arith.mulf %330, %331 : vector<16x1xf32>
    %333 = arith.mulf %327, %327 : vector<16x1xf32>
    %334 = arith.subf %332, %333 : vector<16x1xf32>
    %cst_132 = arith.constant 0.000000e+00 : f32
    %335 = vector.broadcast %cst_132 : f32 to vector<16x1xf32>
    %336 = arith.maximumf %334, %335 : vector<16x1xf32>
    %337 = vector.broadcast %327 : vector<16x1xf32> to vector<16x64xf32>
    %338 = arith.subf %321, %337 : vector<16x64xf32>
    %cst_133 = arith.constant 9.99999996E-13 : f32
    %339 = vector.broadcast %cst_133 : f32 to vector<16x1xf32>
    %340 = arith.addf %336, %339 : vector<16x1xf32>
    %341 = math.rsqrt %340 : vector<16x1xf32>
    %342 = vector.broadcast %341 : vector<16x1xf32> to vector<16x64xf32>
    %343 = arith.mulf %338, %342 : vector<16x64xf32>
    %344 = vector.broadcast %322 : vector<1x64xf32> to vector<16x64xf32>
    %345 = arith.mulf %343, %344 : vector<16x64xf32>
    %346 = vector.broadcast %323 : vector<1x64xf32> to vector<16x64xf32>
    %347 = arith.addf %345, %346 : vector<16x64xf32>
    %c0_134 = arith.constant 0 : index
    %c0_135 = arith.constant 0 : index
    %348 = vector.load %arg8[%c0_134, %c0_135] : memref<64x128xf32, #tpu.memory_space<vmem>>, vector<64x128xf32>
    %cst_136 = arith.constant dense<0.000000e+00> : vector<16x128xf32>
    %349 = tpu.matmul %347, %348, %cst_136 {dimension_numbers = #tpu.dot_dimension_numbers<[1], [0], [0], [1], [0, 0, 1, 1], [], []>} : vector<16x64xf32>, vector<64x128xf32>, vector<16x128xf32> -> vector<16x128xf32>
    %c0_137 = arith.constant 0 : index
    %c0_138 = arith.constant 0 : index
    %350 = vector.load %arg9[%c0_137, %c0_138] : memref<1x128xf32, #tpu.memory_space<vmem>>, vector<1x128xf32>
    %351 = vector.broadcast %350 : vector<1x128xf32> to vector<16x128xf32>
    %352 = arith.addf %349, %351 : vector<16x128xf32>
    %c0_139 = arith.constant 0 : index
    %c0_140 = arith.constant 0 : index
    %353 = vector.load %arg10[%c0_139, %c0_140] : memref<16x128xf32, #tpu.memory_space<vmem>>, vector<16x128xf32>
    tpu.vector_store %arg10[%c0_139, %c0_140], %352 {strides = array<i32>} : memref<16x128xf32, #tpu.memory_space<vmem>>, vector<16x128xf32>,
    return
  }
}

</mosaic_0001>

<llo_original>
// kernel: forward.1
$region0: #{forward.1}
  #allocation0 [shape = 'u32[]', space=smem, size = 0x4, offset = 0x4, fixed_abs, tag = 'smem constant byte address 0x4 - core index']
  #allocation1 [shape = 'u32[72,128]{1,0:T(1,128)}', space=vmem, size = 0x9000, scoped, tag = 'internal scratch']
  %s0 = inlined_call_operand.vmem [shape: f32[16,64], index: 0, kind: input, shape index: {}]
  %s1 = inlined_call_operand.vmem [shape: f32[4,8,8], index: 1, kind: input, shape index: {}]
  %s2 = inlined_call_operand.vmem [shape: f32[20,64], index: 2, kind: input, shape index: {}]
  %s3 = inlined_call_operand.vmem [shape: f32[2,1,256], index: 3, kind: input, shape index: {}]
  %s4 = inlined_call_operand.vmem [shape: f32[2,64,192], index: 4, kind: input, shape index: {}]
  %s5 = inlined_call_operand.vmem [shape: f32[2,64,64], index: 5, kind: input, shape index: {}]
  %s6 = inlined_call_operand.vmem [shape: f32[2,64,256], index: 6, kind: input, shape index: {}]
  %s7 = inlined_call_operand.vmem [shape: f32[2,256,64], index: 7, kind: input, shape index: {}]
  %s8 = inlined_call_operand.vmem [shape: f32[64,128], index: 8, kind: input, shape index: {}]
  %s9 = inlined_call_operand.vmem [shape: f32[1,128], index: 9, kind: input, shape index: {}]
  %s10 = inlined_call_operand.vmem [shape: f32[16,128], index: 10, kind: output, shape index: {}]
  %s11 = sld [smem:[#allocation0]]
  $region50: #{forward.1} parent=0
    _
  %s13 = ssub.s32 1, %s11
  %s14 = scalar_select 0, %s13, %s11
  // Predicated region
  $region2: #{forward.1} parent=0 // pred_check
    _
  $region3: #{forward.1} parent=0 // pred_check_branch
    %16 = sbr.rel (0) target = $region5
  $region4: #{forward.1} parent=0 // pred_region
    _
  $region5: #{forward.1} parent=0 // pred_fallthru
    _
  // Predicated region
  $region6: #{forward.1} parent=0 // pred_check
    _
  $region7: #{forward.1} parent=0 // pred_check_branch
    %18 = sbr.rel (0) target = $region9
  $region8: #{forward.1} parent=0 // pred_region
    _
  $region9: #{forward.1} parent=0 // pred_fallthru
    _
  // Predicated region
  $region10: #{forward.1} parent=0 // pred_check
    _
  $region11: #{forward.1} parent=0 // pred_check_branch
    %20 = sbr.rel (0) target = $region13
  $region12: #{forward.1} parent=0 // pred_region
    _
  $region13: #{forward.1} parent=0 // pred_fallthru
    _
  // Predicated region
  $region14: #{forward.1} parent=0 // pred_check
    _
  $region15: #{forward.1} parent=0 // pred_check_branch
    %22 = sbr.rel (0) target = $region17
  $region16: #{forward.1} parent=0 // pred_region
    _
  $region17: #{forward.1} parent=0 // pred_fallthru
    _
  // Predicated region
  $region18: #{forward.1} parent=0 // pred_check
    _
  $region19: #{forward.1} parent=0 // pred_check_branch
    %24 = sbr.rel (0) target = $region21
  $region20: #{forward.1} parent=0 // pred_region
    _
  $region21: #{forward.1} parent=0 // pred_fallthru
    _
  // Predicated region
  $region22: #{forward.1} parent=0 // pred_check
    _
  $region23: #{forward.1} parent=0 // pred_check_branch
    %26 = sbr.rel (0) target = $region25
  $region24: #{forward.1} parent=0 // pred_region
    _
  $region25: #{forward.1} parent=0 // pred_fallthru
    _
  // Predicated region
  $region26: #{forward.1} parent=0 // pred_check
    _
  $region27: #{forward.1} parent=0 // pred_check_branch
    %28 = sbr.rel (0) target = $region29
  $region28: #{forward.1} parent=0 // pred_region
    _
  $region29: #{forward.1} parent=0 // pred_fallthru
    _
  // Predicated region
  $region30: #{forward.1} parent=0 // pred_check
    _
  $region31: #{forward.1} parent=0 // pred_check_branch
    %30 = sbr.rel (0) target = $region33
  $region32: #{forward.1} parent=0 // pred_region
    _
  $region33: #{forward.1} parent=0 // pred_fallthru
    _
  // Predicated region
  $region34: #{forward.1} parent=0 // pred_check
    _
  $region35: #{forward.1} parent=0 // pred_check_branch
    %32 = sbr.rel (0) target = $region37
  $region36: #{forward.1} parent=0 // pred_region
    _
  $region37: #{forward.1} parent=0 // pred_fallthru
    _
  // Predicated region
  $region38: #{forward.1} parent=0 // pred_check
    _
  $region39: #{forward.1} parent=0 // pred_check_branch
    %34 = sbr.rel (0) target = $region41
  $region40: #{forward.1} parent=0 // pred_region
    _
  $region41: #{forward.1} parent=0 // pred_fallthru
    _
  %v35 = vld [vmem:[%s0] sm:$0xff]
  %v36 = vld [vmem:[%s0 + $0x8] sm:$0xff]
  %v37 = vld [vmem:[%s2] sm:$0x1]
  %v38 = vld [vmem:[%s2 + $0x1] sm:$0x1]
  %vm39 = vcmask 523264
  %v40 = vsel %vm39, %v35, 0.0
  %41 = vadd.xlane.f32.xlu0 %v40
  %v42 = vpop.xlane.xlu0 %41
  %v43 = vsel %vm39, %v36, 0.0
  %44 = vadd.xlane.f32.xlu0 %v43
  %v45 = vpop.xlane.xlu0 %44
  %v46 = vmul.f32 %v42, 0.015625
  %v47 = vmul.f32 %v45, 0.015625
  %v48 = vmul.f32 %v35, %v35
  %v49 = vmul.f32 %v36, %v36
  %v50 = vsel %vm39, %v48, 0.0
  %51 = vadd.xlane.f32.xlu0 %v50
  %v52 = vpop.xlane.xlu0 %51
  %v53 = vsel %vm39, %v49, 0.0
  %54 = vadd.xlane.f32.xlu0 %v53
  %v55 = vpop.xlane.xlu0 %54
  %v56 = vmul.f32 %v52, 0.015625
  %v57 = vmul.f32 %v55, 0.015625
  %v58 = vmul.f32 %v46, %v46
  %v59 = vmul.f32 %v47, %v47
  %v60 = vsub.f32 %v56, %v58
  %v61 = vsub.f32 %v57, %v59
  %v62 = vmax.f32 %v60, 0.0
  %v63 = vmax.f32 %v61, 0.0
  %v64 = vsub.f32 %v35, %v46
  %v65 = vsub.f32 %v36, %v47
  %v66 = vadd.f32 %v62, 1e-12
  %v67 = vadd.f32 %v63, 1e-12
  %v68 = vrsqrt.pop %v66
  %v69 = vmul.f32 %v68, %v66
  %v70 = vmul.f32 %v69, %v68
  %v71 = vmul.f32 0.5, %v70
  %v72 = vsub.f32 1.5, %v71
  %v73 = vmul.f32 %v68, %v72
  %vm74 = vweird.f32 %v66
  %vm75 = vweird.f32 %v68
  %vm76 = vmor %vm74, %vm75
  %v77 = vsel %vm76, %v68, %v73
  %v78 = vrsqrt.pop %v67
  %v79 = vmul.f32 %v78, %v67
  %v80 = vmul.f32 %v79, %v78
  %v81 = vmul.f32 0.5, %v80
  %v82 = vsub.f32 1.5, %v81
  %v83 = vmul.f32 %v78, %v82
  %vm84 = vweird.f32 %v67
  %vm85 = vweird.f32 %v78
  %vm86 = vmor %vm84, %vm85
  %v87 = vsel %vm86, %v78, %v83
  %v88 = vmul.f32 %v64, %v77
  %v89 = vmul.f32 %v65, %v87
  %v90 = vperm.slane %v37, 0
  %v91 = vmul.f32 %v88, %v90
  %v92 = vmul.f32 %v89, %v90
  %v93 = vperm.slane %v38, 0
  %v94 = vadd.f32 %v91, %v93
  %v95 = vadd.f32 %v92, %v93
  %v96 = vld [vmem:[%s1] sm:$0xff]
  %v97 = vld [vmem:[%s1 + $0x8] sm:$0xff]
  %v98 = vld [vmem:[%s1 + $0x10] sm:$0xff]
  %v99 = vld [vmem:[%s1 + $0x18] sm:$0xff]
  %v100 = vld [vmem:[%s4] sm:$0xff]
  %v101 = vld [vmem:[%s4 + $0x8] sm:$0xff]
  %v102 = vld [vmem:[%s4 + $0x10] sm:$0xff]
  %v103 = vld [vmem:[%s4 + $0x18] sm:$0xff]
  %v104 = vld [vmem:[%s4 + $0x20] sm:$0xff]
  %v105 = vld [vmem:[%s4 + $0x28] sm:$0xff]
  %v106 = vld [vmem:[%s4 + $0x30] sm:$0xff]
  %v107 = vld [vmem:[%s4 + $0x38] sm:$0xff]
  %v108 = vld [vmem:[%s4 + $0x40] sm:$0xff]
  %v109 = vld [vmem:[%s4 + $0x48] sm:$0xff]
  %v110 = vld [vmem:[%s4 + $0x50] sm:$0xff]
  %v111 = vld [vmem:[%s4 + $0x58] sm:$0xff]
  %v112 = vld [vmem:[%s4 + $0x60] sm:$0xff]
  %v113 = vld [vmem:[%s4 + $0x68] sm:$0xff]
  %v114 = vld [vmem:[%s4 + $0x70] sm:$0xff]
  %v115 = vld [vmem:[%s4 + $0x78] sm:$0xff]
  %v117 = vsel %vm39, %v94, 0
  %v120 = vsel %vm39, %v95, 0
  %122 = vmatpush.msra.mxu0 0.0
  %123 = vmatpush.msra.mxu0 0.0
  %124 = vmatpush.msra.mxu0 0.0
  %125 = vmatpush.msra.mxu0 0.0
  %126 = vmatpush.msra.mxu0 0.0
  %127 = vmatpush.msra.mxu0 0.0
  %128 = vmatpush.msra.mxu0 0.0
  %129 = vmatpush.msra.mxu0 0.0
  %130 = vmatpush.msra.mxu0 %v114
  %131 = vmatpush.msra.mxu0 %v112
  %132 = vmatpush.msra.mxu0 %v110
  %133 = vmatpush.msra.mxu0 %v108
  %134 = vmatpush.msra.mxu0 %v106
  %135 = vmatpush.msra.mxu0 %v104
  %136 = vmatpush.msra.mxu0 %v102
  %137 = vmatpush.msra.mxu0 %v100
  %138 = vmatmul.f32.gmra.mxu0 %v117
  %v139 = vpop.f32.mrf.mxu0
  %v140 = vadd.f32 0.0, %v139
  %141 = vmatmul.f32.gmra.mxu0 %v120
  %v142 = vpop.f32.mrf.mxu0
  %v143 = vadd.f32 0.0, %v142
  %144 = vdwg.mxu0
  %145 = vmatpush.msra.mxu0 0.0
  %146 = vmatpush.msra.mxu0 0.0
  %147 = vmatpush.msra.mxu0 0.0
  %148 = vmatpush.msra.mxu0 0.0
  %149 = vmatpush.msra.mxu0 0.0
  %150 = vmatpush.msra.mxu0 0.0
  %151 = vmatpush.msra.mxu0 0.0
  %152 = vmatpush.msra.mxu0 0.0
  %153 = vmatpush.msra.mxu0 %v115
  %154 = vmatpush.msra.mxu0 %v113
  %155 = vmatpush.msra.mxu0 %v111
  %156 = vmatpush.msra.mxu0 %v109
  %157 = vmatpush.msra.mxu0 %v107
  %158 = vmatpush.msra.mxu0 %v105
  %159 = vmatpush.msra.mxu0 %v103
  %160 = vmatpush.msra.mxu0 %v101
  %161 = vmatmul.f32.gmra.mxu0 %v117
  %v162 = vpop.f32.mrf.mxu0
  %v163 = vadd.f32 0.0, %v162
  %164 = vmatmul.f32.gmra.mxu0 %v120
  %v165 = vpop.f32.mrf.mxu0
  %v166 = vadd.f32 0.0, %v165
  %167 = vdwg.mxu0
  %v168 = vld [vmem:[%s2 + $0x2] sm:$0x1]
  %v169 = vperm.slane %v168, 0
  %v170 = vadd.f32 %v140, %v169
  %v171 = vadd.f32 %v143, %v169
  %174 = vrot.lane.b32.xlu0 %v170, 96
  %v175 = vpop.permute.xlu0 %174
  %176 = vrot.lane.b32.xlu0 %v171, 96
  %v177 = vpop.permute.xlu0 %176
  %v178 = vld [vmem:[%s2 + $0x3] sm:$0x1]
  %v179 = vperm.slane %v178, 0
  %181 = vrot.lane.b32.xlu0 %v179, 64
  %v182 = vpop.permute.xlu0 %181
  %v184 = vadd.f32 %v140, %v182
  %v185 = vadd.f32 %v143, %v182
  %188 = vrot.lane.b32.xlu0 %v184, 96
  %v189 = vpop.permute.xlu0 %188
  %190 = vrot.lane.b32.xlu0 %v185, 96
  %v191 = vpop.permute.xlu0 %190
  %v192 = vld [vmem:[%s2 + $0x4] sm:$0x1]
  %v193 = vperm.slane %v192, 0
  %v194 = vadd.f32 %v163, %v193
  %v195 = vadd.f32 %v166, %v193
  %198 = vrot.lane.b32.xlu0 %v194, 96
  %v199 = vpop.permute.xlu0 %198
  %200 = vrot.lane.b32.xlu0 %v195, 96
  %v201 = vpop.permute.xlu0 %200
  %204 = vrot.lane.b32.xlu0 %v184, 64
  %v205 = vpop.permute.xlu0 %204
  %vm206 = vcmask 261120
  %v207 = vsel %vm206, %v170, 0
  %v209 = vsel %vm206, %v205, 0
  %211 = vmatpush.xpose.msra.mxu0 0.0
  %212 = vmatpush.xpose.msra.mxu0 0.0
  %213 = vmatpush.xpose.msra.mxu0 0.0
  %214 = vmatpush.xpose.msra.mxu0 0.0
  %215 = vmatpush.xpose.msra.mxu0 0.0
  %216 = vmatpush.xpose.msra.mxu0 0.0
  %217 = vmatpush.xpose.msra.mxu0 0.0
  %218 = vmatpush.xpose.msra.mxu0 0.0
  %219 = vmatpush.xpose.msra.mxu0 0.0
  %220 = vmatpush.xpose.msra.mxu0 0.0
  %221 = vmatpush.xpose.msra.mxu0 0.0
  %222 = vmatpush.xpose.msra.mxu0 0.0
  %223 = vmatpush.xpose.msra.mxu0 0.0
  %224 = vmatpush.xpose.msra.mxu0 0.0
  %225 = vmatpush.xpose.msra.mxu0 0.0
  %226 = vmatpush.xpose.msra.mxu0 %v209
  %227 = vmatmul.f32.gmra.mxu0 %v207
  %v228 = vpop.f32.mrf.mxu0
  %v229 = vadd.f32 0.0, %v228
  %230 = vdwg.mxu0
  %231 = vrot.lane.b32.xlu0 %v185, 64
  %v232 = vpop.permute.xlu0 %231
  %v233 = vsel %vm206, %v171, 0
  %v235 = vsel %vm206, %v232, 0
  %237 = vmatpush.xpose.msra.mxu0 0.0
  %238 = vmatpush.xpose.msra.mxu0 0.0
  %239 = vmatpush.xpose.msra.mxu0 0.0
  %240 = vmatpush.xpose.msra.mxu0 0.0
  %241 = vmatpush.xpose.msra.mxu0 0.0
  %242 = vmatpush.xpose.msra.mxu0 0.0
  %243 = vmatpush.xpose.msra.mxu0 0.0
  %244 = vmatpush.xpose.msra.mxu0 0.0
  %245 = vmatpush.xpose.msra.mxu0 0.0
  %246 = vmatpush.xpose.msra.mxu0 0.0
  %247 = vmatpush.xpose.msra.mxu0 0.0
  %248 = vmatpush.xpose.msra.mxu0 0.0
  %249 = vmatpush.xpose.msra.mxu0 0.0
  %250 = vmatpush.xpose.msra.mxu0 0.0
  %251 = vmatpush.xpose.msra.mxu0 0.0
  %252 = vmatpush.xpose.msra.mxu0 %v235
  %253 = vmatmul.f32.gmra.mxu0 %v233
  %v254 = vpop.f32.mrf.mxu0
  %v255 = vadd.f32 0.0, %v254
  %256 = vdwg.mxu0
  %257 = vrot.lane.b32.xlu0 %v189, 64
  %v258 = vpop.permute.xlu0 %257
  %v259 = vsel %vm206, %v175, 0
  %v261 = vsel %vm206, %v258, 0
  %263 = vmatpush.xpose.msra.mxu0 0.0
  %264 = vmatpush.xpose.msra.mxu0 0.0
  %265 = vmatpush.xpose.msra.mxu0 0.0
  %266 = vmatpush.xpose.msra.mxu0 0.0
  %267 = vmatpush.xpose.msra.mxu0 0.0
  %268 = vmatpush.xpose.msra.mxu0 0.0
  %269 = vmatpush.xpose.msra.mxu0 0.0
  %270 = vmatpush.xpose.msra.mxu0 0.0
  %271 = vmatpush.xpose.msra.mxu0 0.0
  %272 = vmatpush.xpose.msra.mxu0 0.0
  %273 = vmatpush.xpose.msra.mxu0 0.0
  %274 = vmatpush.xpose.msra.mxu0 0.0
  %275 = vmatpush.xpose.msra.mxu0 0.0
  %276 = vmatpush.xpose.msra.mxu0 0.0
  %277 = vmatpush.xpose.msra.mxu0 0.0
  %278 = vmatpush.xpose.msra.mxu0 %v261
  %279 = vmatmul.f32.gmra.mxu0 %v259
  %v280 = vpop.f32.mrf.mxu0
  %v281 = vadd.f32 0.0, %v280
  %282 = vdwg.mxu0
  %283 = vrot.lane.b32.xlu0 %v191, 64
  %v284 = vpop.permute.xlu0 %283
  %v285 = vsel %vm206, %v177, 0
  %v287 = vsel %vm206, %v284, 0
  %289 = vmatpush.xpose.msra.mxu0 0.0
  %290 = vmatpush.xpose.msra.mxu0 0.0
  %291 = vmatpush.xpose.msra.mxu0 0.0
  %292 = vmatpush.xpose.msra.mxu0 0.0
  %293 = vmatpush.xpose.msra.mxu0 0.0
  %294 = vmatpush.xpose.msra.mxu0 0.0
  %295 = vmatpush.xpose.msra.mxu0 0.0
  %296 = vmatpush.xpose.msra.mxu0 0.0
  %297 = vmatpush.xpose.msra.mxu0 0.0
  %298 = vmatpush.xpose.msra.mxu0 0.0
  %299 = vmatpush.xpose.msra.mxu0 0.0
  %300 = vmatpush.xpose.msra.mxu0 0.0
  %301 = vmatpush.xpose.msra.mxu0 0.0
  %302 = vmatpush.xpose.msra.mxu0 0.0
  %303 = vmatpush.xpose.msra.mxu0 0.0
  %304 = vmatpush.xpose.msra.mxu0 %v287
  %305 = vmatmul.f32.gmra.mxu0 %v285
  %v306 = vpop.f32.mrf.mxu0
  %v307 = vadd.f32 0.0, %v306
  %308 = vdwg.mxu0
  %v309 = vmul.f32 %v229, 0.17677669
  %v310 = vmul.f32 %v255, 0.17677669
  %v311 = vmul.f32 %v281, 0.17677669
  %v312 = vmul.f32 %v307, 0.17677669
  %v313 = vadd.f32 %v309, %v96
  %v314 = vadd.f32 %v310, %v97
  %v315 = vadd.f32 %v311, %v98
  %v316 = vadd.f32 %v312, %v99
  %vm317 = vcmask 64512
  %v318 = vsel %vm317, %v313, -inf
  %319 = vmax.xlane.f32.xlu0 %v318
  %v320 = vpop.xlane.xlu0 %319
  %v321 = vsel %vm317, %v314, -inf
  %322 = vmax.xlane.f32.xlu0 %v321
  %v323 = vpop.xlane.xlu0 %322
  %v324 = vsel %vm317, %v315, -inf
  %325 = vmax.xlane.f32.xlu0 %v324
  %v326 = vpop.xlane.xlu0 %325
  %v327 = vsel %vm317, %v316, -inf
  %328 = vmax.xlane.f32.xlu0 %v327
  %v329 = vpop.xlane.xlu0 %328
  %v330 = vsub.f32 %v313, %v320
  %v331 = vsub.f32 %v314, %v323
  %v332 = vsub.f32 %v315, %v326
  %v333 = vsub.f32 %v316, %v329
  %v334 = vmul.f32 %v330, 1.442695
  %v335 = vpow.pop %v334
  %v336 = vmul.f32 %v331, 1.442695
  %v337 = vpow.pop %v336
  %v338 = vmul.f32 %v332, 1.442695
  %v339 = vpow.pop %v338
  %v340 = vmul.f32 %v333, 1.442695
  %v341 = vpow.pop %v340
  %v342 = vsel %vm317, %v335, 0.0
  %343 = vadd.xlane.f32.xlu0 %v342
  %v344 = vpop.xlane.xlu0 %343
  %v345 = vsel %vm317, %v337, 0.0
  %346 = vadd.xlane.f32.xlu0 %v345
  %v347 = vpop.xlane.xlu0 %346
  %v348 = vsel %vm317, %v339, 0.0
  %349 = vadd.xlane.f32.xlu0 %v348
  %v350 = vpop.xlane.xlu0 %349
  %v351 = vsel %vm317, %v341, 0.0
  %352 = vadd.xlane.f32.xlu0 %v351
  %v353 = vpop.xlane.xlu0 %352
  %v354 = vrcp.pop %v344
  %v355 = vrcp.pop %v347
  %v356 = vrcp.pop %v350
  %v357 = vrcp.pop %v353
  %v358 = vmul.f32 %v335, %v354
  %v359 = vmul.f32 %v337, %v355
  %v360 = vmul.f32 %v339, %v356
  %v361 = vmul.f32 %v341, %v357
  %v363 = vsel %vm317, %v358, 0
  %365 = vmatpush.msra.mxu0 0.0
  %366 = vmatpush.msra.mxu0 0.0
  %367 = vmatpush.msra.mxu0 0.0
  %368 = vmatpush.msra.mxu0 0.0
  %369 = vmatpush.msra.mxu0 0.0
  %370 = vmatpush.msra.mxu0 0.0
  %371 = vmatpush.msra.mxu0 0.0
  %372 = vmatpush.msra.mxu0 0.0
  %373 = vmatpush.msra.mxu0 0.0
  %374 = vmatpush.msra.mxu0 0.0
  %375 = vmatpush.msra.mxu0 0.0
  %376 = vmatpush.msra.mxu0 0.0
  %377 = vmatpush.msra.mxu0 0.0
  %378 = vmatpush.msra.mxu0 0.0
  %379 = vmatpush.msra.mxu0 0.0
  %380 = vmatpush.msra.mxu0 %v194
  %381 = vmatmul.f32.gmra.mxu0 %v363
  %v382 = vpop.f32.mrf.mxu0
  %v383 = vadd.f32 0.0, %v382
  %384 = vdwg.mxu0
  %v386 = vsel %vm317, %v359, 0
  %388 = vmatpush.msra.mxu0 0.0
  %389 = vmatpush.msra.mxu0 0.0
  %390 = vmatpush.msra.mxu0 0.0
  %391 = vmatpush.msra.mxu0 0.0
  %392 = vmatpush.msra.mxu0 0.0
  %393 = vmatpush.msra.mxu0 0.0
  %394 = vmatpush.msra.mxu0 0.0
  %395 = vmatpush.msra.mxu0 0.0
  %396 = vmatpush.msra.mxu0 0.0
  %397 = vmatpush.msra.mxu0 0.0
  %398 = vmatpush.msra.mxu0 0.0
  %399 = vmatpush.msra.mxu0 0.0
  %400 = vmatpush.msra.mxu0 0.0
  %401 = vmatpush.msra.mxu0 0.0
  %402 = vmatpush.msra.mxu0 0.0
  %403 = vmatpush.msra.mxu0 %v195
  %404 = vmatmul.f32.gmra.mxu0 %v386
  %v405 = vpop.f32.mrf.mxu0
  %v406 = vadd.f32 0.0, %v405
  %407 = vdwg.mxu0
  %v409 = vsel %vm317, %v360, 0
  %411 = vmatpush.msra.mxu0 0.0
  %412 = vmatpush.msra.mxu0 0.0
  %413 = vmatpush.msra.mxu0 0.0
  %414 = vmatpush.msra.mxu0 0.0
  %415 = vmatpush.msra.mxu0 0.0
  %416 = vmatpush.msra.mxu0 0.0
  %417 = vmatpush.msra.mxu0 0.0
  %418 = vmatpush.msra.mxu0 0.0
  %419 = vmatpush.msra.mxu0 0.0
  %420 = vmatpush.msra.mxu0 0.0
  %421 = vmatpush.msra.mxu0 0.0
  %422 = vmatpush.msra.mxu0 0.0
  %423 = vmatpush.msra.mxu0 0.0
  %424 = vmatpush.msra.mxu0 0.0
  %425 = vmatpush.msra.mxu0 0.0
  %426 = vmatpush.msra.mxu0 %v199
  %427 = vmatmul.f32.gmra.mxu0 %v409
  %v428 = vpop.f32.mrf.mxu0
  %v429 = vadd.f32 0.0, %v428
  %430 = vdwg.mxu0
  %v432 = vsel %vm317, %v361, 0
  %434 = vmatpush.msra.mxu0 0.0
  %435 = vmatpush.msra.mxu0 0.0
  %436 = vmatpush.msra.mxu0 0.0
  %437 = vmatpush.msra.mxu0 0.0
  %438 = vmatpush.msra.mxu0 0.0
  %439 = vmatpush.msra.mxu0 0.0
  %440 = vmatpush.msra.mxu0 0.0
  %441 = vmatpush.msra.mxu0 0.0
  %442 = vmatpush.msra.mxu0 0.0
  %443 = vmatpush.msra.mxu0 0.0
  %444 = vmatpush.msra.mxu0 0.0
  %445 = vmatpush.msra.mxu0 0.0
  %446 = vmatpush.msra.mxu0 0.0
  %447 = vmatpush.msra.mxu0 0.0
  %448 = vmatpush.msra.mxu0 0.0
  %449 = vmatpush.msra.mxu0 %v201
  %450 = vmatmul.f32.gmra.mxu0 %v432
  %v451 = vpop.f32.mrf.mxu0
  %v452 = vadd.f32 0.0, %v451
  %453 = vdwg.mxu0
  %456 = vrot.lane.b32.xlu0 %v429, 32
  %v457 = vpop.permute.xlu0 %456
  %458 = vrot.lane.b32.xlu0 %v452, 32
  %v459 = vpop.permute.xlu0 %458
  %v462 = vsel %vm206, %v383, %v457
  %v463 = vsel %vm206, %v406, %v459
  %v464 = vld [vmem:[%s5] sm:$0xff]
  %v465 = vld [vmem:[%s5 + $0x8] sm:$0xff]
  %v466 = vld [vmem:[%s5 + $0x10] sm:$0xff]
  %v467 = vld [vmem:[%s5 + $0x18] sm:$0xff]
  %v468 = vld [vmem:[%s5 + $0x20] sm:$0xff]
  %v469 = vld [vmem:[%s5 + $0x28] sm:$0xff]
  %v470 = vld [vmem:[%s5 + $0x30] sm:$0xff]
  %v471 = vld [vmem:[%s5 + $0x38] sm:$0xff]
  %v472 = vld [vmem:[%s2 + $0x5] sm:$0x1]
  %v473 = vperm.slane %v472, 0
  %v475 = vsel %vm39, %v462, 0
  %v478 = vsel %vm39, %v463, 0
  %480 = vmatpush.msra.mxu0 0.0
  %481 = vmatpush.msra.mxu0 0.0
  %482 = vmatpush.msra.mxu0 0.0
  %483 = vmatpush.msra.mxu0 0.0
  %484 = vmatpush.msra.mxu0 0.0
  %485 = vmatpush.msra.mxu0 0.0
  %486 = vmatpush.msra.mxu0 0.0
  %487 = vmatpush.msra.mxu0 0.0
  %488 = vmatpush.msra.mxu0 %v471
  %489 = vmatpush.msra.mxu0 %v470
  %490 = vmatpush.msra.mxu0 %v469
  %491 = vmatpush.msra.mxu0 %v468
  %492 = vmatpush.msra.mxu0 %v467
  %493 = vmatpush.msra.mxu0 %v466
  %494 = vmatpush.msra.mxu0 %v465
  %495 = vmatpush.msra.mxu0 %v464
  %496 = vmatmul.f32.gmra.mxu0 %v475
  %v497 = vpop.f32.mrf.mxu0
  %v498 = vadd.f32 %v473, %v497
  %499 = vmatmul.f32.gmra.mxu0 %v478
  %v500 = vpop.f32.mrf.mxu0
  %v501 = vadd.f32 %v473, %v500
  %502 = vdwg.mxu0
  %v503 = vadd.f32 %v94, %v498
  %v504 = vadd.f32 %v95, %v501
  %v505 = vld [vmem:[%s2 + $0x6] sm:$0x1]
  %v506 = vld [vmem:[%s2 + $0x7] sm:$0x1]
  %v507 = vsel %vm39, %v503, 0.0
  %508 = vadd.xlane.f32.xlu0 %v507
  %v509 = vpop.xlane.xlu0 %508
  %v510 = vsel %vm39, %v504, 0.0
  %511 = vadd.xlane.f32.xlu0 %v510
  %v512 = vpop.xlane.xlu0 %511
  %v513 = vmul.f32 %v509, 0.015625
  %v514 = vmul.f32 %v512, 0.015625
  %v515 = vmul.f32 %v503, %v503
  %v516 = vmul.f32 %v504, %v504
  %v517 = vsel %vm39, %v515, 0.0
  %518 = vadd.xlane.f32.xlu0 %v517
  %v519 = vpop.xlane.xlu0 %518
  %v520 = vsel %vm39, %v516, 0.0
  %521 = vadd.xlane.f32.xlu0 %v520
  %v522 = vpop.xlane.xlu0 %521
  %v523 = vmul.f32 %v519, 0.015625
  %v524 = vmul.f32 %v522, 0.015625
  %v525 = vmul.f32 %v513, %v513
  %v526 = vmul.f32 %v514, %v514
  %v527 = vsub.f32 %v523, %v525
  %v528 = vsub.f32 %v524, %v526
  %v529 = vmax.f32 %v527, 0.0
  %v530 = vmax.f32 %v528, 0.0
  %v531 = vsub.f32 %v503, %v513
  %v532 = vsub.f32 %v504, %v514
  %v533 = vadd.f32 %v529, 1e-12
  %v534 = vadd.f32 %v530, 1e-12
  %v535 = vrsqrt.pop %v533
  %v536 = vmul.f32 %v535, %v533
  %v537 = vmul.f32 %v536, %v535
  %v538 = vmul.f32 0.5, %v537
  %v539 = vsub.f32 1.5, %v538
  %v540 = vmul.f32 %v535, %v539
  %vm541 = vweird.f32 %v533
  %vm542 = vweird.f32 %v535
  %vm543 = vmor %vm541, %vm542
  %v544 = vsel %vm543, %v535, %v540
  %v545 = vrsqrt.pop %v534
  %v546 = vmul.f32 %v545, %v534
  %v547 = vmul.f32 %v546, %v545
  %v548 = vmul.f32 0.5, %v547
  %v549 = vsub.f32 1.5, %v548
  %v550 = vmul.f32 %v545, %v549
  %vm551 = vweird.f32 %v534
  %vm552 = vweird.f32 %v545
  %vm553 = vmor %vm551, %vm552
  %v554 = vsel %vm553, %v545, %v550
  %v555 = vmul.f32 %v531, %v544
  %v556 = vmul.f32 %v532, %v554
  %v557 = vperm.slane %v505, 0
  %v558 = vmul.f32 %v555, %v557
  %v559 = vmul.f32 %v556, %v557
  %v560 = vperm.slane %v506, 0
  %v561 = vadd.f32 %v558, %v560
  %v562 = vadd.f32 %v559, %v560
  %v563 = vld [vmem:[%s6] sm:$0xff]
  %v564 = vld [vmem:[%s6 + $0x8] sm:$0xff]
  %v565 = vld [vmem:[%s6 + $0x10] sm:$0xff]
  %v566 = vld [vmem:[%s6 + $0x18] sm:$0xff]
  %v567 = vld [vmem:[%s6 + $0x20] sm:$0xff]
  %v568 = vld [vmem:[%s6 + $0x28] sm:$0xff]
  %v569 = vld [vmem:[%s6 + $0x30] sm:$0xff]
  %v570 = vld [vmem:[%s6 + $0x38] sm:$0xff]
  %v571 = vld [vmem:[%s6 + $0x40] sm:$0xff]
  %v572 = vld [vmem:[%s6 + $0x48] sm:$0xff]
  %v573 = vld [vmem:[%s6 + $0x50] sm:$0xff]
  %v574 = vld [vmem:[%s6 + $0x58] sm:$0xff]
  %v575 = vld [vmem:[%s6 + $0x60] sm:$0xff]
  %v576 = vld [vmem:[%s6 + $0x68] sm:$0xff]
  %v577 = vld [vmem:[%s6 + $0x70] sm:$0xff]
  %v578 = vld [vmem:[%s6 + $0x78] sm:$0xff]
  %v579 = vld [vmem:[%s3] sm:$0x3]
  %v581 = vperm.slane %v579, 0
  %v582 = vperm.slane %v579, 1
  %v586 = vsel %vm39, %v561, 0
  %v589 = vsel %vm39, %v562, 0
  %591 = vmatpush.msra.mxu0 0.0
  %592 = vmatpush.msra.mxu0 0.0
  %593 = vmatpush.msra.mxu0 0.0
  %594 = vmatpush.msra.mxu0 0.0
  %595 = vmatpush.msra.mxu0 0.0
  %596 = vmatpush.msra.mxu0 0.0
  %597 = vmatpush.msra.mxu0 0.0
  %598 = vmatpush.msra.mxu0 0.0
  %599 = vmatpush.msra.mxu0 %v577
  %600 = vmatpush.msra.mxu0 %v575
  %601 = vmatpush.msra.mxu0 %v573
  %602 = vmatpush.msra.mxu0 %v571
  %603 = vmatpush.msra.mxu0 %v569
  %604 = vmatpush.msra.mxu0 %v567
  %605 = vmatpush.msra.mxu0 %v565
  %606 = vmatpush.msra.mxu0 %v563
  %607 = vmatmul.f32.gmra.mxu0 %v586
  %v608 = vpop.f32.mrf.mxu0
  %v609 = vadd.f32 %v581, %v608
  %610 = vmatmul.f32.gmra.mxu0 %v589
  %v611 = vpop.f32.mrf.mxu0
  %v612 = vadd.f32 %v581, %v611
  %613 = vdwg.mxu0
  %614 = vmatpush.msra.mxu0 0.0
  %615 = vmatpush.msra.mxu0 0.0
  %616 = vmatpush.msra.mxu0 0.0
  %617 = vmatpush.msra.mxu0 0.0
  %618 = vmatpush.msra.mxu0 0.0
  %619 = vmatpush.msra.mxu0 0.0
  %620 = vmatpush.msra.mxu0 0.0
  %621 = vmatpush.msra.mxu0 0.0
  %622 = vmatpush.msra.mxu0 %v578
  %623 = vmatpush.msra.mxu0 %v576
  %624 = vmatpush.msra.mxu0 %v574
  %625 = vmatpush.msra.mxu0 %v572
  %626 = vmatpush.msra.mxu0 %v570
  %627 = vmatpush.msra.mxu0 %v568
  %628 = vmatpush.msra.mxu0 %v566
  %629 = vmatpush.msra.mxu0 %v564
  %630 = vmatmul.f32.gmra.mxu0 %v586
  %v631 = vpop.f32.mrf.mxu0
  %v632 = vadd.f32 %v582, %v631
  %633 = vmatmul.f32.gmra.mxu0 %v589
  %v634 = vpop.f32.mrf.mxu0
  %v635 = vadd.f32 %v582, %v634
  %636 = vdwg.mxu0
  %v637 = vmul.f32 %v609, 0.5
  %v638 = vmul.f32 %v632, 0.5
  %v639 = vmul.f32 %v612, 0.5
  %v640 = vmul.f32 %v635, 0.5
  %v641 = vmul.f32 %v609, 0.70710677
  %v642 = vmul.f32 %v632, 0.70710677
  %v643 = vmul.f32 %v612, 0.70710677
  %v644 = vmul.f32 %v635, 0.70710677
  %vm645 = vcmp.ge.f32.partialorder %v641, 0.0
  %vm646 = vcmp.ge.f32.partialorder %v642, 0.0
  %vm647 = vcmp.ge.f32.partialorder %v643, 0.0
  %vm648 = vcmp.ge.f32.partialorder %v644, 0.0
  %v649 = vsel %vm645, 1.0, -1.0
  %v650 = vsel %vm646, 1.0, -1.0
  %v651 = vsel %vm647, 1.0, -1.0
  %v652 = vsel %vm648, 1.0, -1.0
  %v653 = vand.u32 2147483647, %v641
  %v654 = vand.u32 2147483647, %v642
  %v655 = vand.u32 2147483647, %v643
  %v656 = vand.u32 2147483647, %v644
  %v657 = vmul.f32 %v653, 0.3275911
  %v658 = vmul.f32 %v654, 0.3275911
  %v659 = vmul.f32 %v655, 0.3275911
  %v660 = vmul.f32 %v656, 0.3275911
  %v661 = vadd.f32 %v657, 1.0
  %v662 = vadd.f32 %v658, 1.0
  %v663 = vadd.f32 %v659, 1.0
  %v664 = vadd.f32 %v660, 1.0
  %v665 = vrcp.pop %v661
  %v666 = vmul.f32 %v661, %v665
  %v667 = vsub.f32 1.0, %v666
  %v668 = vmul.f32 %v665, %v667
  %v669 = vadd.f32 %v665, %v668
  %vm670 = vweird.f32 %v661
  %vm671 = vweird.f32 %v665
  %vm672 = vmor %vm670, %vm671
  %v673 = vsel %vm672, %v665, %v669
  %v674 = vand.u32 2147483647, %v661
  %vm675 = vcmp.eq.f32.partialorder %v674, 8.507059e+37
  %v676 = vand.u32 %v661, 2147483648
  %v677 = vor.u32 1.1754944e-38, %v676
  %v678 = vsel %vm675, %v677, %v673
  %v679 = vmul.f32 1.0, %v678
  %v680 = vrcp.pop %v662
  %v681 = vmul.f32 %v662, %v680
  %v682 = vsub.f32 1.0, %v681
  %v683 = vmul.f32 %v680, %v682
  %v684 = vadd.f32 %v680, %v683
  %vm685 = vweird.f32 %v662
  %vm686 = vweird.f32 %v680
  %vm687 = vmor %vm685, %vm686
  %v688 = vsel %vm687, %v680, %v684
  %v689 = vand.u32 2147483647, %v662
  %vm690 = vcmp.eq.f32.partialorder %v689, 8.507059e+37
  %v691 = vand.u32 %v662, 2147483648
  %v692 = vor.u32 1.1754944e-38, %v691
  %v693 = vsel %vm690, %v692, %v688
  %v694 = vmul.f32 1.0, %v693
  %v695 = vrcp.pop %v663
  %v696 = vmul.f32 %v663, %v695
  %v697 = vsub.f32 1.0, %v696
  %v698 = vmul.f32 %v695, %v697
  %v699 = vadd.f32 %v695, %v698
  %vm700 = vweird.f32 %v663
  %vm701 = vweird.f32 %v695
  %vm702 = vmor %vm700, %vm701
  %v703 = vsel %vm702, %v695, %v699
  %v704 = vand.u32 2147483647, %v663
  %vm705 = vcmp.eq.f32.partialorder %v704, 8.507059e+37
  %v706 = vand.u32 %v663, 2147483648
  %v707 = vor.u32 1.1754944e-38, %v706
  %v708 = vsel %vm705, %v707, %v703
  %v709 = vmul.f32 1.0, %v708
  %v710 = vrcp.pop %v664
  %v711 = vmul.f32 %v664, %v710
  %v712 = vsub.f32 1.0, %v711
  %v713 = vmul.f32 %v710, %v712
  %v714 = vadd.f32 %v710, %v713
  %vm715 = vweird.f32 %v664
  %vm716 = vweird.f32 %v710
  %vm717 = vmor %vm715, %vm716
  %v718 = vsel %vm717, %v710, %v714
  %v719 = vand.u32 2147483647, %v664
  %vm720 = vcmp.eq.f32.partialorder %v719, 8.507059e+37
  %v721 = vand.u32 %v664, 2147483648
  %v722 = vor.u32 1.1754944e-38, %v721
  %v723 = vsel %vm720, %v722, %v718
  %v724 = vmul.f32 1.0, %v723
  %v725 = vmul.f32 %v679, 1.0614054
  %v726 = vmul.f32 %v694, 1.0614054
  %v727 = vmul.f32 %v709, 1.0614054
  %v728 = vmul.f32 %v724, 1.0614054
  %v729 = vadd.f32 %v725, -1.4531521
  %v730 = vadd.f32 %v726, -1.4531521
  %v731 = vadd.f32 %v727, -1.4531521
  %v732 = vadd.f32 %v728, -1.4531521
  %v733 = vmul.f32 %v729, %v679
  %v734 = vmul.f32 %v730, %v694
  %v735 = vmul.f32 %v731, %v709
  %v736 = vmul.f32 %v732, %v724
  %v737 = vadd.f32 %v733, 1.4214138
  %v738 = vadd.f32 %v734, 1.4214138
  %v739 = vadd.f32 %v735, 1.4214138
  %v740 = vadd.f32 %v736, 1.4214138
  %v741 = vmul.f32 %v737, %v679
  %v742 = vmul.f32 %v738, %v694
  %v743 = vmul.f32 %v739, %v709
  %v744 = vmul.f32 %v740, %v724
  %v745 = vadd.f32 %v741, -0.28449672
  %v746 = vadd.f32 %v742, -0.28449672
  %v747 = vadd.f32 %v743, -0.28449672
  %v748 = vadd.f32 %v744, -0.28449672
  %v749 = vmul.f32 %v745, %v679
  %v750 = vmul.f32 %v746, %v694
  %v751 = vmul.f32 %v747, %v709
  %v752 = vmul.f32 %v748, %v724
  %v753 = vadd.f32 %v749, 0.2548296
  %v754 = vadd.f32 %v750, 0.2548296
  %v755 = vadd.f32 %v751, 0.2548296
  %v756 = vadd.f32 %v752, 0.2548296
  %v757 = vmul.f32 %v753, %v679
  %v758 = vmul.f32 %v754, %v694
  %v759 = vmul.f32 %v755, %v709
  %v760 = vmul.f32 %v756, %v724
  %v761 = vsub.f32 0.0, %v653
  %v762 = vsub.f32 0.0, %v654
  %v763 = vsub.f32 0.0, %v655
  %v764 = vsub.f32 0.0, %v656
  %v765 = vmul.f32 %v761, %v653
  %v766 = vmul.f32 %v762, %v654
  %v767 = vmul.f32 %v763, %v655
  %v768 = vmul.f32 %v764, %v656
  %v769 = vmul.f32 %v765, 1.442695
  %v770 = vpow.pop %v769
  %v771 = vmul.f32 %v766, 1.442695
  %v772 = vpow.pop %v771
  %v773 = vmul.f32 %v767, 1.442695
  %v774 = vpow.pop %v773
  %v775 = vmul.f32 %v768, 1.442695
  %v776 = vpow.pop %v775
  %v777 = vmul.f32 %v757, %v770
  %v778 = vmul.f32 %v758, %v772
  %v779 = vmul.f32 %v759, %v774
  %v780 = vmul.f32 %v760, %v776
  %v781 = vsub.f32 1.0, %v777
  %v782 = vsub.f32 1.0, %v778
  %v783 = vsub.f32 1.0, %v779
  %v784 = vsub.f32 1.0, %v780
  %v785 = vmul.f32 %v649, %v781
  %v786 = vmul.f32 %v650, %v782
  %v787 = vmul.f32 %v651, %v783
  %v788 = vmul.f32 %v652, %v784
  %v789 = vadd.f32 %v785, 1.0
  %v790 = vadd.f32 %v786, 1.0
  %v791 = vadd.f32 %v787, 1.0
  %v792 = vadd.f32 %v788, 1.0
  %v793 = vmul.f32 %v637, %v789
  %v794 = vmul.f32 %v638, %v790
  %v795 = vmul.f32 %v639, %v791
  %v796 = vmul.f32 %v640, %v792
  %v797 = vld [vmem:[%s7] sm:$0xff]
  %v798 = vld [vmem:[%s7 + $0x8] sm:$0xff]
  %v799 = vld [vmem:[%s7 + $0x10] sm:$0xff]
  %v800 = vld [vmem:[%s7 + $0x18] sm:$0xff]
  %v801 = vld [vmem:[%s7 + $0x20] sm:$0xff]
  %v802 = vld [vmem:[%s7 + $0x28] sm:$0xff]
  %v803 = vld [vmem:[%s7 + $0x30] sm:$0xff]
  %v804 = vld [vmem:[%s7 + $0x38] sm:$0xff]
  %v805 = vld [vmem:[%s7 + $0x40] sm:$0xff]
  %v806 = vld [vmem:[%s7 + $0x48] sm:$0xff]
  %v807 = vld [vmem:[%s7 + $0x50] sm:$0xff]
  %v808 = vld [vmem:[%s7 + $0x58] sm:$0xff]
  %v809 = vld [vmem:[%s7 + $0x60] sm:$0xff]
  %v810 = vld [vmem:[%s7 + $0x68] sm:$0xff]
  %v811 = vld [vmem:[%s7 + $0x70] sm:$0xff]
  %v812 = vld [vmem:[%s7 + $0x78] sm:$0xff]
  %v813 = vld [vmem:[%s7 + $0x80] sm:$0xff]
  %v814 = vld [vmem:[%s7 + $0x88] sm:$0xff]
  %v815 = vld [vmem:[%s7 + $0x90] sm:$0xff]
  %v816 = vld [vmem:[%s7 + $0x98] sm:$0xff]
  %v817 = vld [vmem:[%s7 + $0xa0] sm:$0xff]
  %v818 = vld [vmem:[%s7 + $0xa8] sm:$0xff]
  %v819 = vld [vmem:[%s7 + $0xb0] sm:$0xff]
  %v820 = vld [vmem:[%s7 + $0xb8] sm:$0xff]
  %v821 = vld [vmem:[%s7 + $0xc0] sm:$0xff]
  %v822 = vld [vmem:[%s7 + $0xc8] sm:$0xff]
  %v823 = vld [vmem:[%s7 + $0xd0] sm:$0xff]
  %v824 = vld [vmem:[%s7 + $0xd8] sm:$0xff]
  %v825 = vld [vmem:[%s7 + $0xe0] sm:$0xff]
  %v826 = vld [vmem:[%s7 + $0xe8] sm:$0xff]
  %v827 = vld [vmem:[%s7 + $0xf0] sm:$0xff]
  %v828 = vld [vmem:[%s7 + $0xf8] sm:$0xff]
  %v829 = vld [vmem:[%s2 + $0x8] sm:$0x1]
  %v830 = vperm.slane %v829, 0
  %831 = vmatpush.msra.mxu0 %v812
  %832 = vmatpush.msra.mxu0 %v811
  %833 = vmatpush.msra.mxu0 %v810
  %834 = vmatpush.msra.mxu0 %v809
  %835 = vmatpush.msra.mxu0 %v808
  %836 = vmatpush.msra.mxu0 %v807
  %837 = vmatpush.msra.mxu0 %v806
  %838 = vmatpush.msra.mxu0 %v805
  %839 = vmatpush.msra.mxu0 %v804
  %840 = vmatpush.msra.mxu0 %v803
  %841 = vmatpush.msra.mxu0 %v802
  %842 = vmatpush.msra.mxu0 %v801
  %843 = vmatpush.msra.mxu0 %v800
  %844 = vmatpush.msra.mxu0 %v799
  %845 = vmatpush.msra.mxu0 %v798
  %846 = vmatpush.msra.mxu0 %v797
  %847 = vmatmul.f32.gmra.mxu0 %v793
  %v848 = vpop.f32.mrf.mxu0
  %v849 = vadd.f32 %v830, %v848
  %850 = vmatmul.f32.gmra.mxu0 %v795
  %v851 = vpop.f32.mrf.mxu0
  %v852 = vadd.f32 %v830, %v851
  %853 = vdwg.mxu0
  %854 = vmatpush.msra.mxu0 %v828
  %855 = vmatpush.msra.mxu0 %v827
  %856 = vmatpush.msra.mxu0 %v826
  %857 = vmatpush.msra.mxu0 %v825
  %858 = vmatpush.msra.mxu0 %v824
  %859 = vmatpush.msra.mxu0 %v823
  %860 = vmatpush.msra.mxu0 %v822
  %861 = vmatpush.msra.mxu0 %v821
  %862 = vmatpush.msra.mxu0 %v820
  %863 = vmatpush.msra.mxu0 %v819
  %864 = vmatpush.msra.mxu0 %v818
  %865 = vmatpush.msra.mxu0 %v817
  %866 = vmatpush.msra.mxu0 %v816
  %867 = vmatpush.msra.mxu0 %v815
  %868 = vmatpush.msra.mxu0 %v814
  %869 = vmatpush.msra.mxu0 %v813
  %870 = vmatmul.f32.gmra.mxu0 %v794
  %v871 = vpop.f32.mrf.mxu0
  %v872 = vadd.f32 %v849, %v871
  %873 = vmatmul.f32.gmra.mxu0 %v796
  %v874 = vpop.f32.mrf.mxu0
  %v875 = vadd.f32 %v852, %v874
  %876 = vdwg.mxu0
  %v877 = vadd.f32 %v561, %v872
  %v878 = vadd.f32 %v562, %v875
  %v879 = vld [vmem:[%s2 + $0x9] sm:$0x1]
  %v880 = vld [vmem:[%s2 + $0xa] sm:$0x1]
  %v881 = vsel %vm39, %v877, 0.0
  %882 = vadd.xlane.f32.xlu0 %v881
  %v883 = vpop.xlane.xlu0 %882
  %v884 = vsel %vm39, %v878, 0.0
  %885 = vadd.xlane.f32.xlu0 %v884
  %v886 = vpop.xlane.xlu0 %885
  %v887 = vmul.f32 %v883, 0.015625
  %v888 = vmul.f32 %v886, 0.015625
  %v889 = vmul.f32 %v877, %v877
  %v890 = vmul.f32 %v878, %v878
  %v891 = vsel %vm39, %v889, 0.0
  %892 = vadd.xlane.f32.xlu0 %v891
  %v893 = vpop.xlane.xlu0 %892
  %v894 = vsel %vm39, %v890, 0.0
  %895 = vadd.xlane.f32.xlu0 %v894
  %v896 = vpop.xlane.xlu0 %895
  %v897 = vmul.f32 %v893, 0.015625
  %v898 = vmul.f32 %v896, 0.015625
  %v899 = vmul.f32 %v887, %v887
  %v900 = vmul.f32 %v888, %v888
  %v901 = vsub.f32 %v897, %v899
  %v902 = vsub.f32 %v898, %v900
  %v903 = vmax.f32 %v901, 0.0
  %v904 = vmax.f32 %v902, 0.0
  %v905 = vsub.f32 %v877, %v887
  %v906 = vsub.f32 %v878, %v888
  %v907 = vadd.f32 %v903, 1e-12
  %v908 = vadd.f32 %v904, 1e-12
  %v909 = vrsqrt.pop %v907
  %v910 = vmul.f32 %v909, %v907
  %v911 = vmul.f32 %v910, %v909
  %v912 = vmul.f32 0.5, %v911
  %v913 = vsub.f32 1.5, %v912
  %v914 = vmul.f32 %v909, %v913
  %vm915 = vweird.f32 %v907
  %vm916 = vweird.f32 %v909
  %vm917 = vmor %vm915, %vm916
  %v918 = vsel %vm917, %v909, %v914
  %v919 = vrsqrt.pop %v908
  %v920 = vmul.f32 %v919, %v908
  %v921 = vmul.f32 %v920, %v919
  %v922 = vmul.f32 0.5, %v921
  %v923 = vsub.f32 1.5, %v922
  %v924 = vmul.f32 %v919, %v923
  %vm925 = vweird.f32 %v908
  %vm926 = vweird.f32 %v919
  %vm927 = vmor %vm925, %vm926
  %v928 = vsel %vm927, %v919, %v924
  %v929 = vmul.f32 %v905, %v918
  %v930 = vmul.f32 %v906, %v928
  %v931 = vperm.slane %v879, 0
  %v932 = vmul.f32 %v929, %v931
  %v933 = vmul.f32 %v930, %v931
  %v934 = vperm.slane %v880, 0
  %v935 = vadd.f32 %v932, %v934
  %v936 = vadd.f32 %v933, %v934
  %s937 = scalar_lea.vmem %s4, 128
  %v938 = vld [vmem:[%s937] sm:$0xff]
  %v939 = vld [vmem:[%s937 + $0x8] sm:$0xff]
  %v940 = vld [vmem:[%s937 + $0x10] sm:$0xff]
  %v941 = vld [vmem:[%s937 + $0x18] sm:$0xff]
  %v942 = vld [vmem:[%s937 + $0x20] sm:$0xff]
  %v943 = vld [vmem:[%s937 + $0x28] sm:$0xff]
  %v944 = vld [vmem:[%s937 + $0x30] sm:$0xff]
  %v945 = vld [vmem:[%s937 + $0x38] sm:$0xff]
  %v946 = vld [vmem:[%s937 + $0x40] sm:$0xff]
  %v947 = vld [vmem:[%s937 + $0x48] sm:$0xff]
  %v948 = vld [vmem:[%s937 + $0x50] sm:$0xff]
  %v949 = vld [vmem:[%s937 + $0x58] sm:$0xff]
  %v950 = vld [vmem:[%s937 + $0x60] sm:$0xff]
  %v951 = vld [vmem:[%s937 + $0x68] sm:$0xff]
  %v952 = vld [vmem:[%s937 + $0x70] sm:$0xff]
  %v953 = vld [vmem:[%s937 + $0x78] sm:$0xff]
  %v955 = vsel %vm39, %v935, 0
  %v958 = vsel %vm39, %v936, 0
  %960 = vmatpush.msra.mxu0 0.0
  %961 = vmatpush.msra.mxu0 0.0
  %962 = vmatpush.msra.mxu0 0.0
  %963 = vmatpush.msra.mxu0 0.0
  %964 = vmatpush.msra.mxu0 0.0
  %965 = vmatpush.msra.mxu0 0.0
  %966 = vmatpush.msra.mxu0 0.0
  %967 = vmatpush.msra.mxu0 0.0
  %968 = vmatpush.msra.mxu0 %v952
  %969 = vmatpush.msra.mxu0 %v950
  %970 = vmatpush.msra.mxu0 %v948
  %971 = vmatpush.msra.mxu0 %v946
  %972 = vmatpush.msra.mxu0 %v944
  %973 = vmatpush.msra.mxu0 %v942
  %974 = vmatpush.msra.mxu0 %v940
  %975 = vmatpush.msra.mxu0 %v938
  %976 = vmatmul.f32.gmra.mxu0 %v955
  %v977 = vpop.f32.mrf.mxu0
  %v978 = vadd.f32 0.0, %v977
  %979 = vmatmul.f32.gmra.mxu0 %v958
  %v980 = vpop.f32.mrf.mxu0
  %v981 = vadd.f32 0.0, %v980
  %982 = vdwg.mxu0
  %983 = vmatpush.msra.mxu0 0.0
  %984 = vmatpush.msra.mxu0 0.0
  %985 = vmatpush.msra.mxu0 0.0
  %986 = vmatpush.msra.mxu0 0.0
  %987 = vmatpush.msra.mxu0 0.0
  %988 = vmatpush.msra.mxu0 0.0
  %989 = vmatpush.msra.mxu0 0.0
  %990 = vmatpush.msra.mxu0 0.0
  %991 = vmatpush.msra.mxu0 %v953
  %992 = vmatpush.msra.mxu0 %v951
  %993 = vmatpush.msra.mxu0 %v949
  %994 = vmatpush.msra.mxu0 %v947
  %995 = vmatpush.msra.mxu0 %v945
  %996 = vmatpush.msra.mxu0 %v943
  %997 = vmatpush.msra.mxu0 %v941
  %998 = vmatpush.msra.mxu0 %v939
  %999 = vmatmul.f32.gmra.mxu0 %v955
  %v1000 = vpop.f32.mrf.mxu0
  %v1001 = vadd.f32 0.0, %v1000
  %1002 = vmatmul.f32.gmra.mxu0 %v958
  %v1003 = vpop.f32.mrf.mxu0
  %v1004 = vadd.f32 0.0, %v1003
  %1005 = vdwg.mxu0
  %v1006 = vld [vmem:[%s2 + $0xb] sm:$0x1]
  %v1007 = vperm.slane %v1006, 0
  %v1008 = vadd.f32 %v978, %v1007
  %v1009 = vadd.f32 %v981, %v1007
  %1012 = vrot.lane.b32.xlu0 %v1008, 96
  %v1013 = vpop.permute.xlu0 %1012
  %1014 = vrot.lane.b32.xlu0 %v1009, 96
  %v1015 = vpop.permute.xlu0 %1014
  %v1016 = vld [vmem:[%s2 + $0xc] sm:$0x1]
  %v1017 = vperm.slane %v1016, 0
  %1019 = vrot.lane.b32.xlu0 %v1017, 64
  %v1020 = vpop.permute.xlu0 %1019
  %v1022 = vadd.f32 %v978, %v1020
  %v1023 = vadd.f32 %v981, %v1020
  %1026 = vrot.lane.b32.xlu0 %v1022, 96
  %v1027 = vpop.permute.xlu0 %1026
  %1028 = vrot.lane.b32.xlu0 %v1023, 96
  %v1029 = vpop.permute.xlu0 %1028
  %v1030 = vld [vmem:[%s2 + $0xd] sm:$0x1]
  %v1031 = vperm.slane %v1030, 0
  %v1032 = vadd.f32 %v1001, %v1031
  %v1033 = vadd.f32 %v1004, %v1031
  %1036 = vrot.lane.b32.xlu0 %v1032, 96
  %v1037 = vpop.permute.xlu0 %1036
  %1038 = vrot.lane.b32.xlu0 %v1033, 96
  %v1039 = vpop.permute.xlu0 %1038
  %1042 = vrot.lane.b32.xlu0 %v1022, 64
  %v1043 = vpop.permute.xlu0 %1042
  %v1044 = vsel %vm206, %v1008, 0
  %v1046 = vsel %vm206, %v1043, 0
  %1048 = vmatpush.xpose.msra.mxu0 0.0
  %1049 = vmatpush.xpose.msra.mxu0 0.0
  %1050 = vmatpush.xpose.msra.mxu0 0.0
  %1051 = vmatpush.xpose.msra.mxu0 0.0
  %1052 = vmatpush.xpose.msra.mxu0 0.0
  %1053 = vmatpush.xpose.msra.mxu0 0.0
  %1054 = vmatpush.xpose.msra.mxu0 0.0
  %1055 = vmatpush.xpose.msra.mxu0 0.0
  %1056 = vmatpush.xpose.msra.mxu0 0.0
  %1057 = vmatpush.xpose.msra.mxu0 0.0
  %1058 = vmatpush.xpose.msra.mxu0 0.0
  %1059 = vmatpush.xpose.msra.mxu0 0.0
  %1060 = vmatpush.xpose.msra.mxu0 0.0
  %1061 = vmatpush.xpose.msra.mxu0 0.0
  %1062 = vmatpush.xpose.msra.mxu0 0.0
  %1063 = vmatpush.xpose.msra.mxu0 %v1046
  %1064 = vmatmul.f32.gmra.mxu0 %v1044
  %v1065 = vpop.f32.mrf.mxu0
  %v1066 = vadd.f32 0.0, %v1065
  %1067 = vdwg.mxu0
  %1068 = vrot.lane.b32.xlu0 %v1023, 64
  %v1069 = vpop.permute.xlu0 %1068
  %v1070 = vsel %vm206, %v1009, 0
  %v1072 = vsel %vm206, %v1069, 0
  %1074 = vmatpush.xpose.msra.mxu0 0.0
  %1075 = vmatpush.xpose.msra.mxu0 0.0
  %1076 = vmatpush.xpose.msra.mxu0 0.0
  %1077 = vmatpush.xpose.msra.mxu0 0.0
  %1078 = vmatpush.xpose.msra.mxu0 0.0
  %1079 = vmatpush.xpose.msra.mxu0 0.0
  %1080 = vmatpush.xpose.msra.mxu0 0.0
  %1081 = vmatpush.xpose.msra.mxu0 0.0
  %1082 = vmatpush.xpose.msra.mxu0 0.0
  %1083 = vmatpush.xpose.msra.mxu0 0.0
  %1084 = vmatpush.xpose.msra.mxu0 0.0
  %1085 = vmatpush.xpose.msra.mxu0 0.0
  %1086 = vmatpush.xpose.msra.mxu0 0.0
  %1087 = vmatpush.xpose.msra.mxu0 0.0
  %1088 = vmatpush.xpose.msra.mxu0 0.0
  %1089 = vmatpush.xpose.msra.mxu0 %v1072
  %1090 = vmatmul.f32.gmra.mxu0 %v1070
  %v1091 = vpop.f32.mrf.mxu0
  %v1092 = vadd.f32 0.0, %v1091
  %1093 = vdwg.mxu0
  %1094 = vrot.lane.b32.xlu0 %v1027, 64
  %v1095 = vpop.permute.xlu0 %1094
  %v1096 = vsel %vm206, %v1013, 0
  %v1098 = vsel %vm206, %v1095, 0
  %1100 = vmatpush.xpose.msra.mxu0 0.0
  %1101 = vmatpush.xpose.msra.mxu0 0.0
  %1102 = vmatpush.xpose.msra.mxu0 0.0
  %1103 = vmatpush.xpose.msra.mxu0 0.0
  %1104 = vmatpush.xpose.msra.mxu0 0.0
  %1105 = vmatpush.xpose.msra.mxu0 0.0
  %1106 = vmatpush.xpose.msra.mxu0 0.0
  %1107 = vmatpush.xpose.msra.mxu0 0.0
  %1108 = vmatpush.xpose.msra.mxu0 0.0
  %1109 = vmatpush.xpose.msra.mxu0 0.0
  %1110 = vmatpush.xpose.msra.mxu0 0.0
  %1111 = vmatpush.xpose.msra.mxu0 0.0
  %1112 = vmatpush.xpose.msra.mxu0 0.0
  %1113 = vmatpush.xpose.msra.mxu0 0.0
  %1114 = vmatpush.xpose.msra.mxu0 0.0
  %1115 = vmatpush.xpose.msra.mxu0 %v1098
  %1116 = vmatmul.f32.gmra.mxu0 %v1096
  %v1117 = vpop.f32.mrf.mxu0
  %v1118 = vadd.f32 0.0, %v1117
  %1119 = vdwg.mxu0
  %1120 = vrot.lane.b32.xlu0 %v1029, 64
  %v1121 = vpop.permute.xlu0 %1120
  %v1122 = vsel %vm206, %v1015, 0
  %v1124 = vsel %vm206, %v1121, 0
  %1126 = vmatpush.xpose.msra.mxu0 0.0
  %1127 = vmatpush.xpose.msra.mxu0 0.0
  %1128 = vmatpush.xpose.msra.mxu0 0.0
  %1129 = vmatpush.xpose.msra.mxu0 0.0
  %1130 = vmatpush.xpose.msra.mxu0 0.0
  %1131 = vmatpush.xpose.msra.mxu0 0.0
  %1132 = vmatpush.xpose.msra.mxu0 0.0
  %1133 = vmatpush.xpose.msra.mxu0 0.0
  %1134 = vmatpush.xpose.msra.mxu0 0.0
  %1135 = vmatpush.xpose.msra.mxu0 0.0
  %1136 = vmatpush.xpose.msra.mxu0 0.0
  %1137 = vmatpush.xpose.msra.mxu0 0.0
  %1138 = vmatpush.xpose.msra.mxu0 0.0
  %1139 = vmatpush.xpose.msra.mxu0 0.0
  %1140 = vmatpush.xpose.msra.mxu0 0.0
  %1141 = vmatpush.xpose.msra.mxu0 %v1124
  %1142 = vmatmul.f32.gmra.mxu0 %v1122
  %v1143 = vpop.f32.mrf.mxu0
  %v1144 = vadd.f32 0.0, %v1143
  %1145 = vdwg.mxu0
  %v1146 = vmul.f32 %v1066, 0.17677669
  %v1147 = vmul.f32 %v1092, 0.17677669
  %v1148 = vmul.f32 %v1118, 0.17677669
  %v1149 = vmul.f32 %v1144, 0.17677669
  %v1150 = vadd.f32 %v1146, %v96
  %v1151 = vadd.f32 %v1147, %v97
  %v1152 = vadd.f32 %v1148, %v98
  %v1153 = vadd.f32 %v1149, %v99
  %v1154 = vsel %vm317, %v1150, -inf
  %1155 = vmax.xlane.f32.xlu0 %v1154
  %v1156 = vpop.xlane.xlu0 %1155
  %v1157 = vsel %vm317, %v1151, -inf
  %1158 = vmax.xlane.f32.xlu0 %v1157
  %v1159 = vpop.xlane.xlu0 %1158
  %v1160 = vsel %vm317, %v1152, -inf
  %1161 = vmax.xlane.f32.xlu0 %v1160
  %v1162 = vpop.xlane.xlu0 %1161
  %v1163 = vsel %vm317, %v1153, -inf
  %1164 = vmax.xlane.f32.xlu0 %v1163
  %v1165 = vpop.xlane.xlu0 %1164
  %v1166 = vsub.f32 %v1150, %v1156
  %v1167 = vsub.f32 %v1151, %v1159
  %v1168 = vsub.f32 %v1152, %v1162
  %v1169 = vsub.f32 %v1153, %v1165
  %v1170 = vmul.f32 %v1166, 1.442695
  %v1171 = vpow.pop %v1170
  %v1172 = vmul.f32 %v1167, 1.442695
  %v1173 = vpow.pop %v1172
  %v1174 = vmul.f32 %v1168, 1.442695
  %v1175 = vpow.pop %v1174
  %v1176 = vmul.f32 %v1169, 1.442695
  %v1177 = vpow.pop %v1176
  %v1178 = vsel %vm317, %v1171, 0.0
  %1179 = vadd.xlane.f32.xlu0 %v1178
  %v1180 = vpop.xlane.xlu0 %1179
  %v1181 = vsel %vm317, %v1173, 0.0
  %1182 = vadd.xlane.f32.xlu0 %v1181
  %v1183 = vpop.xlane.xlu0 %1182
  %v1184 = vsel %vm317, %v1175, 0.0
  %1185 = vadd.xlane.f32.xlu0 %v1184
  %v1186 = vpop.xlane.xlu0 %1185
  %v1187 = vsel %vm317, %v1177, 0.0
  %1188 = vadd.xlane.f32.xlu0 %v1187
  %v1189 = vpop.xlane.xlu0 %1188
  %v1190 = vrcp.pop %v1180
  %v1191 = vrcp.pop %v1183
  %v1192 = vrcp.pop %v1186
  %v1193 = vrcp.pop %v1189
  %v1194 = vmul.f32 %v1171, %v1190
  %v1195 = vmul.f32 %v1173, %v1191
  %v1196 = vmul.f32 %v1175, %v1192
  %v1197 = vmul.f32 %v1177, %v1193
  %v1199 = vsel %vm317, %v1194, 0
  %1201 = vmatpush.msra.mxu0 0.0
  %1202 = vmatpush.msra.mxu0 0.0
  %1203 = vmatpush.msra.mxu0 0.0
  %1204 = vmatpush.msra.mxu0 0.0
  %1205 = vmatpush.msra.mxu0 0.0
  %1206 = vmatpush.msra.mxu0 0.0
  %1207 = vmatpush.msra.mxu0 0.0
  %1208 = vmatpush.msra.mxu0 0.0
  %1209 = vmatpush.msra.mxu0 0.0
  %1210 = vmatpush.msra.mxu0 0.0
  %1211 = vmatpush.msra.mxu0 0.0
  %1212 = vmatpush.msra.mxu0 0.0
  %1213 = vmatpush.msra.mxu0 0.0
  %1214 = vmatpush.msra.mxu0 0.0
  %1215 = vmatpush.msra.mxu0 0.0
  %1216 = vmatpush.msra.mxu0 %v1032
  %1217 = vmatmul.f32.gmra.mxu0 %v1199
  %v1218 = vpop.f32.mrf.mxu0
  %v1219 = vadd.f32 0.0, %v1218
  %1220 = vdwg.mxu0
  %v1222 = vsel %vm317, %v1195, 0
  %1224 = vmatpush.msra.mxu0 0.0
  %1225 = vmatpush.msra.mxu0 0.0
  %1226 = vmatpush.msra.mxu0 0.0
  %1227 = vmatpush.msra.mxu0 0.0
  %1228 = vmatpush.msra.mxu0 0.0
  %1229 = vmatpush.msra.mxu0 0.0
  %1230 = vmatpush.msra.mxu0 0.0
  %1231 = vmatpush.msra.mxu0 0.0
  %1232 = vmatpush.msra.mxu0 0.0
  %1233 = vmatpush.msra.mxu0 0.0
  %1234 = vmatpush.msra.mxu0 0.0
  %1235 = vmatpush.msra.mxu0 0.0
  %1236 = vmatpush.msra.mxu0 0.0
  %1237 = vmatpush.msra.mxu0 0.0
  %1238 = vmatpush.msra.mxu0 0.0
  %1239 = vmatpush.msra.mxu0 %v1033
  %1240 = vmatmul.f32.gmra.mxu0 %v1222
  %v1241 = vpop.f32.mrf.mxu0
  %v1242 = vadd.f32 0.0, %v1241
  %1243 = vdwg.mxu0
  %v1245 = vsel %vm317, %v1196, 0
  %1247 = vmatpush.msra.mxu0 0.0
  %1248 = vmatpush.msra.mxu0 0.0
  %1249 = vmatpush.msra.mxu0 0.0
  %1250 = vmatpush.msra.mxu0 0.0
  %1251 = vmatpush.msra.mxu0 0.0
  %1252 = vmatpush.msra.mxu0 0.0
  %1253 = vmatpush.msra.mxu0 0.0
  %1254 = vmatpush.msra.mxu0 0.0
  %1255 = vmatpush.msra.mxu0 0.0
  %1256 = vmatpush.msra.mxu0 0.0
  %1257 = vmatpush.msra.mxu0 0.0
  %1258 = vmatpush.msra.mxu0 0.0
  %1259 = vmatpush.msra.mxu0 0.0
  %1260 = vmatpush.msra.mxu0 0.0
  %1261 = vmatpush.msra.mxu0 0.0
  %1262 = vmatpush.msra.mxu0 %v1037
  %1263 = vmatmul.f32.gmra.mxu0 %v1245
  %v1264 = vpop.f32.mrf.mxu0
  %v1265 = vadd.f32 0.0, %v1264
  %1266 = vdwg.mxu0
  %v1268 = vsel %vm317, %v1197, 0
  %1270 = vmatpush.msra.mxu0 0.0
  %1271 = vmatpush.msra.mxu0 0.0
  %1272 = vmatpush.msra.mxu0 0.0
  %1273 = vmatpush.msra.mxu0 0.0
  %1274 = vmatpush.msra.mxu0 0.0
  %1275 = vmatpush.msra.mxu0 0.0
  %1276 = vmatpush.msra.mxu0 0.0
  %1277 = vmatpush.msra.mxu0 0.0
  %1278 = vmatpush.msra.mxu0 0.0
  %1279 = vmatpush.msra.mxu0 0.0
  %1280 = vmatpush.msra.mxu0 0.0
  %1281 = vmatpush.msra.mxu0 0.0
  %1282 = vmatpush.msra.mxu0 0.0
  %1283 = vmatpush.msra.mxu0 0.0
  %1284 = vmatpush.msra.mxu0 0.0
  %1285 = vmatpush.msra.mxu0 %v1039
  %1286 = vmatmul.f32.gmra.mxu0 %v1268
  %v1287 = vpop.f32.mrf.mxu0
  %v1288 = vadd.f32 0.0, %v1287
  %1289 = vdwg.mxu0
  %1292 = vrot.lane.b32.xlu0 %v1265, 32
  %v1293 = vpop.permute.xlu0 %1292
  %1294 = vrot.lane.b32.xlu0 %v1288, 32
  %v1295 = vpop.permute.xlu0 %1294
  %v1298 = vsel %vm206, %v1219, %v1293
  %v1299 = vsel %vm206, %v1242, %v1295
  %s1300 = scalar_lea.vmem %s5, 64
  %v1301 = vld [vmem:[%s1300] sm:$0xff]
  %v1302 = vld [vmem:[%s1300 + $0x8] sm:$0xff]
  %v1303 = vld [vmem:[%s1300 + $0x10] sm:$0xff]
  %v1304 = vld [vmem:[%s1300 + $0x18] sm:$0xff]
  %v1305 = vld [vmem:[%s1300 + $0x20] sm:$0xff]
  %v1306 = vld [vmem:[%s1300 + $0x28] sm:$0xff]
  %v1307 = vld [vmem:[%s1300 + $0x30] sm:$0xff]
  %v1308 = vld [vmem:[%s1300 + $0x38] sm:$0xff]
  %v1309 = vld [vmem:[%s2 + $0xe] sm:$0x1]
  %v1310 = vperm.slane %v1309, 0
  %v1312 = vsel %vm39, %v1298, 0
  %v1315 = vsel %vm39, %v1299, 0
  %1317 = vmatpush.msra.mxu0 0.0
  %1318 = vmatpush.msra.mxu0 0.0
  %1319 = vmatpush.msra.mxu0 0.0
  %1320 = vmatpush.msra.mxu0 0.0
  %1321 = vmatpush.msra.mxu0 0.0
  %1322 = vmatpush.msra.mxu0 0.0
  %1323 = vmatpush.msra.mxu0 0.0
  %1324 = vmatpush.msra.mxu0 0.0
  %1325 = vmatpush.msra.mxu0 %v1308
  %1326 = vmatpush.msra.mxu0 %v1307
  %1327 = vmatpush.msra.mxu0 %v1306
  %1328 = vmatpush.msra.mxu0 %v1305
  %1329 = vmatpush.msra.mxu0 %v1304
  %1330 = vmatpush.msra.mxu0 %v1303
  %1331 = vmatpush.msra.mxu0 %v1302
  %1332 = vmatpush.msra.mxu0 %v1301
  %1333 = vmatmul.f32.gmra.mxu0 %v1312
  %v1334 = vpop.f32.mrf.mxu0
  %v1335 = vadd.f32 %v1310, %v1334
  %1336 = vmatmul.f32.gmra.mxu0 %v1315
  %v1337 = vpop.f32.mrf.mxu0
  %v1338 = vadd.f32 %v1310, %v1337
  %1339 = vdwg.mxu0
  %v1340 = vadd.f32 %v935, %v1335
  %v1341 = vadd.f32 %v936, %v1338
  %v1342 = vld [vmem:[%s2 + $0xf] sm:$0x1]
  %v1343 = vld [vmem:[%s2 + $0x10] sm:$0x1]
  %v1344 = vsel %vm39, %v1340, 0.0
  %1345 = vadd.xlane.f32.xlu0 %v1344
  %v1346 = vpop.xlane.xlu0 %1345
  %v1347 = vsel %vm39, %v1341, 0.0
  %1348 = vadd.xlane.f32.xlu0 %v1347
  %v1349 = vpop.xlane.xlu0 %1348
  %v1350 = vmul.f32 %v1346, 0.015625
  %v1351 = vmul.f32 %v1349, 0.015625
  %v1352 = vmul.f32 %v1340, %v1340
  %v1353 = vmul.f32 %v1341, %v1341
  %v1354 = vsel %vm39, %v1352, 0.0
  %1355 = vadd.xlane.f32.xlu0 %v1354
  %v1356 = vpop.xlane.xlu0 %1355
  %v1357 = vsel %vm39, %v1353, 0.0
  %1358 = vadd.xlane.f32.xlu0 %v1357
  %v1359 = vpop.xlane.xlu0 %1358
  %v1360 = vmul.f32 %v1356, 0.015625
  %v1361 = vmul.f32 %v1359, 0.015625
  %v1362 = vmul.f32 %v1350, %v1350
  %v1363 = vmul.f32 %v1351, %v1351
  %v1364 = vsub.f32 %v1360, %v1362
  %v1365 = vsub.f32 %v1361, %v1363
  %v1366 = vmax.f32 %v1364, 0.0
  %v1367 = vmax.f32 %v1365, 0.0
  %v1368 = vsub.f32 %v1340, %v1350
  %v1369 = vsub.f32 %v1341, %v1351
  %v1370 = vadd.f32 %v1366, 1e-12
  %v1371 = vadd.f32 %v1367, 1e-12
  %v1372 = vrsqrt.pop %v1370
  %v1373 = vmul.f32 %v1372, %v1370
  %v1374 = vmul.f32 %v1373, %v1372
  %v1375 = vmul.f32 0.5, %v1374
  %v1376 = vsub.f32 1.5, %v1375
  %v1377 = vmul.f32 %v1372, %v1376
  %vm1378 = vweird.f32 %v1370
  %vm1379 = vweird.f32 %v1372
  %vm1380 = vmor %vm1378, %vm1379
  %v1381 = vsel %vm1380, %v1372, %v1377
  %v1382 = vrsqrt.pop %v1371
  %v1383 = vmul.f32 %v1382, %v1371
  %v1384 = vmul.f32 %v1383, %v1382
  %v1385 = vmul.f32 0.5, %v1384
  %v1386 = vsub.f32 1.5, %v1385
  %v1387 = vmul.f32 %v1382, %v1386
  %vm1388 = vweird.f32 %v1371
  %vm1389 = vweird.f32 %v1382
  %vm1390 = vmor %vm1388, %vm1389
  %v1391 = vsel %vm1390, %v1382, %v1387
  %v1392 = vmul.f32 %v1368, %v1381
  %v1393 = vmul.f32 %v1369, %v1391
  %v1394 = vperm.slane %v1342, 0
  %v1395 = vmul.f32 %v1392, %v1394
  %v1396 = vmul.f32 %v1393, %v1394
  %v1397 = vperm.slane %v1343, 0
  %v1398 = vadd.f32 %v1395, %v1397
  %v1399 = vadd.f32 %v1396, %v1397
  %s1400 = scalar_lea.vmem %s6, 128
  %v1401 = vld [vmem:[%s1400] sm:$0xff]
  %v1402 = vld [vmem:[%s1400 + $0x8] sm:$0xff]
  %v1403 = vld [vmem:[%s1400 + $0x10] sm:$0xff]
  %v1404 = vld [vmem:[%s1400 + $0x18] sm:$0xff]
  %v1405 = vld [vmem:[%s1400 + $0x20] sm:$0xff]
  %v1406 = vld [vmem:[%s1400 + $0x28] sm:$0xff]
  %v1407 = vld [vmem:[%s1400 + $0x30] sm:$0xff]
  %v1408 = vld [vmem:[%s1400 + $0x38] sm:$0xff]
  %v1409 = vld [vmem:[%s1400 + $0x40] sm:$0xff]
  %v1410 = vld [vmem:[%s1400 + $0x48] sm:$0xff]
  %v1411 = vld [vmem:[%s1400 + $0x50] sm:$0xff]
  %v1412 = vld [vmem:[%s1400 + $0x58] sm:$0xff]
  %v1413 = vld [vmem:[%s1400 + $0x60] sm:$0xff]
  %v1414 = vld [vmem:[%s1400 + $0x68] sm:$0xff]
  %v1415 = vld [vmem:[%s1400 + $0x70] sm:$0xff]
  %v1416 = vld [vmem:[%s1400 + $0x78] sm:$0xff]
  %s1417 = scalar_lea.vmem %s3, 2
  %v1418 = vld [vmem:[%s1417] sm:$0x3]
  %v1420 = vperm.slane %v1418, 0
  %v1421 = vperm.slane %v1418, 1
  %v1425 = vsel %vm39, %v1398, 0
  %v1428 = vsel %vm39, %v1399, 0
  %1430 = vmatpush.msra.mxu0 0.0
  %1431 = vmatpush.msra.mxu0 0.0
  %1432 = vmatpush.msra.mxu0 0.0
  %1433 = vmatpush.msra.mxu0 0.0
  %1434 = vmatpush.msra.mxu0 0.0
  %1435 = vmatpush.msra.mxu0 0.0
  %1436 = vmatpush.msra.mxu0 0.0
  %1437 = vmatpush.msra.mxu0 0.0
  %1438 = vmatpush.msra.mxu0 %v1415
  %1439 = vmatpush.msra.mxu0 %v1413
  %1440 = vmatpush.msra.mxu0 %v1411
  %1441 = vmatpush.msra.mxu0 %v1409
  %1442 = vmatpush.msra.mxu0 %v1407
  %1443 = vmatpush.msra.mxu0 %v1405
  %1444 = vmatpush.msra.mxu0 %v1403
  %1445 = vmatpush.msra.mxu0 %v1401
  %1446 = vmatmul.f32.gmra.mxu0 %v1425
  %v1447 = vpop.f32.mrf.mxu0
  %v1448 = vadd.f32 %v1420, %v1447
  %1449 = vmatmul.f32.gmra.mxu0 %v1428
  %v1450 = vpop.f32.mrf.mxu0
  %v1451 = vadd.f32 %v1420, %v1450
  %1452 = vdwg.mxu0
  %1453 = vmatpush.msra.mxu0 0.0
  %1454 = vmatpush.msra.mxu0 0.0
  %1455 = vmatpush.msra.mxu0 0.0
  %1456 = vmatpush.msra.mxu0 0.0
  %1457 = vmatpush.msra.mxu0 0.0
  %1458 = vmatpush.msra.mxu0 0.0
  %1459 = vmatpush.msra.mxu0 0.0
  %1460 = vmatpush.msra.mxu0 0.0
  %1461 = vmatpush.msra.mxu0 %v1416
  %1462 = vmatpush.msra.mxu0 %v1414
  %1463 = vmatpush.msra.mxu0 %v1412
  %1464 = vmatpush.msra.mxu0 %v1410
  %1465 = vmatpush.msra.mxu0 %v1408
  %1466 = vmatpush.msra.mxu0 %v1406
  %1467 = vmatpush.msra.mxu0 %v1404
  %1468 = vmatpush.msra.mxu0 %v1402
  %1469 = vmatmul.f32.gmra.mxu0 %v1425
  %v1470 = vpop.f32.mrf.mxu0
  %v1471 = vadd.f32 %v1421, %v1470
  %1472 = vmatmul.f32.gmra.mxu0 %v1428
  %v1473 = vpop.f32.mrf.mxu0
  %v1474 = vadd.f32 %v1421, %v1473
  %1475 = vdwg.mxu0
  %v1476 = vmul.f32 %v1448, 0.5
  %v1477 = vmul.f32 %v1471, 0.5
  %v1478 = vmul.f32 %v1451, 0.5
  %v1479 = vmul.f32 %v1474, 0.5
  %v1480 = vmul.f32 %v1448, 0.70710677
  %v1481 = vmul.f32 %v1471, 0.70710677
  %v1482 = vmul.f32 %v1451, 0.70710677
  %v1483 = vmul.f32 %v1474, 0.70710677
  %vm1484 = vcmp.ge.f32.partialorder %v1480, 0.0
  %vm1485 = vcmp.ge.f32.partialorder %v1481, 0.0
  %vm1486 = vcmp.ge.f32.partialorder %v1482, 0.0
  %vm1487 = vcmp.ge.f32.partialorder %v1483, 0.0
  %v1488 = vsel %vm1484, 1.0, -1.0
  %v1489 = vsel %vm1485, 1.0, -1.0
  %v1490 = vsel %vm1486, 1.0, -1.0
  %v1491 = vsel %vm1487, 1.0, -1.0
  %v1492 = vand.u32 2147483647, %v1480
  %v1493 = vand.u32 2147483647, %v1481
  %v1494 = vand.u32 2147483647, %v1482
  %v1495 = vand.u32 2147483647, %v1483
  %v1496 = vmul.f32 %v1492, 0.3275911
  %v1497 = vmul.f32 %v1493, 0.3275911
  %v1498 = vmul.f32 %v1494, 0.3275911
  %v1499 = vmul.f32 %v1495, 0.3275911
  %v1500 = vadd.f32 %v1496, 1.0
  %v1501 = vadd.f32 %v1497, 1.0
  %v1502 = vadd.f32 %v1498, 1.0
  %v1503 = vadd.f32 %v1499, 1.0
  %v1504 = vrcp.pop %v1500
  %v1505 = vmul.f32 %v1500, %v1504
  %v1506 = vsub.f32 1.0, %v1505
  %v1507 = vmul.f32 %v1504, %v1506
  %v1508 = vadd.f32 %v1504, %v1507
  %vm1509 = vweird.f32 %v1500
  %vm1510 = vweird.f32 %v1504
  %vm1511 = vmor %vm1509, %vm1510
  %v1512 = vsel %vm1511, %v1504, %v1508
  %v1513 = vand.u32 2147483647, %v1500
  %vm1514 = vcmp.eq.f32.partialorder %v1513, 8.507059e+37
  %v1515 = vand.u32 %v1500, 2147483648
  %v1516 = vor.u32 1.1754944e-38, %v1515
  %v1517 = vsel %vm1514, %v1516, %v1512
  %v1518 = vmul.f32 1.0, %v1517
  %v1519 = vrcp.pop %v1501
  %v1520 = vmul.f32 %v1501, %v1519
  %v1521 = vsub.f32 1.0, %v1520
  %v1522 = vmul.f32 %v1519, %v1521
  %v1523 = vadd.f32 %v1519, %v1522
  %vm1524 = vweird.f32 %v1501
  %vm1525 = vweird.f32 %v1519
  %vm1526 = vmor %vm1524, %vm1525
  %v1527 = vsel %vm1526, %v1519, %v1523
  %v1528 = vand.u32 2147483647, %v1501
  %vm1529 = vcmp.eq.f32.partialorder %v1528, 8.507059e+37
  %v1530 = vand.u32 %v1501, 2147483648
  %v1531 = vor.u32 1.1754944e-38, %v1530
  %v1532 = vsel %vm1529, %v1531, %v1527
  %v1533 = vmul.f32 1.0, %v1532
  %v1534 = vrcp.pop %v1502
  %v1535 = vmul.f32 %v1502, %v1534
  %v1536 = vsub.f32 1.0, %v1535
  %v1537 = vmul.f32 %v1534, %v1536
  %v1538 = vadd.f32 %v1534, %v1537
  %vm1539 = vweird.f32 %v1502
  %vm1540 = vweird.f32 %v1534
  %vm1541 = vmor %vm1539, %vm1540
  %v1542 = vsel %vm1541, %v1534, %v1538
  %v1543 = vand.u32 2147483647, %v1502
  %vm1544 = vcmp.eq.f32.partialorder %v1543, 8.507059e+37
  %v1545 = vand.u32 %v1502, 2147483648
  %v1546 = vor.u32 1.1754944e-38, %v1545
  %v1547 = vsel %vm1544, %v1546, %v1542
  %v1548 = vmul.f32 1.0, %v1547
  %v1549 = vrcp.pop %v1503
  %v1550 = vmul.f32 %v1503, %v1549
  %v1551 = vsub.f32 1.0, %v1550
  %v1552 = vmul.f32 %v1549, %v1551
  %v1553 = vadd.f32 %v1549, %v1552
  %vm1554 = vweird.f32 %v1503
  %vm1555 = vweird.f32 %v1549
  %vm1556 = vmor %vm1554, %vm1555
  %v1557 = vsel %vm1556, %v1549, %v1553
  %v1558 = vand.u32 2147483647, %v1503
  %vm1559 = vcmp.eq.f32.partialorder %v1558, 8.507059e+37
  %v1560 = vand.u32 %v1503, 2147483648
  %v1561 = vor.u32 1.1754944e-38, %v1560
  %v1562 = vsel %vm1559, %v1561, %v1557
  %v1563 = vmul.f32 1.0, %v1562
  %v1564 = vmul.f32 %v1518, 1.0614054
  %v1565 = vmul.f32 %v1533, 1.0614054
  %v1566 = vmul.f32 %v1548, 1.0614054
  %v1567 = vmul.f32 %v1563, 1.0614054
  %v1568 = vadd.f32 %v1564, -1.4531521
  %v1569 = vadd.f32 %v1565, -1.4531521
  %v1570 = vadd.f32 %v1566, -1.4531521
  %v1571 = vadd.f32 %v1567, -1.4531521
  %v1572 = vmul.f32 %v1568, %v1518
  %v1573 = vmul.f32 %v1569, %v1533
  %v1574 = vmul.f32 %v1570, %v1548
  %v1575 = vmul.f32 %v1571, %v1563
  %v1576 = vadd.f32 %v1572, 1.4214138
  %v1577 = vadd.f32 %v1573, 1.4214138
  %v1578 = vadd.f32 %v1574, 1.4214138
  %v1579 = vadd.f32 %v1575, 1.4214138
  %v1580 = vmul.f32 %v1576, %v1518
  %v1581 = vmul.f32 %v1577, %v1533
  %v1582 = vmul.f32 %v1578, %v1548
  %v1583 = vmul.f32 %v1579, %v1563
  %v1584 = vadd.f32 %v1580, -0.28449672
  %v1585 = vadd.f32 %v1581, -0.28449672
  %v1586 = vadd.f32 %v1582, -0.28449672
  %v1587 = vadd.f32 %v1583, -0.28449672
  %v1588 = vmul.f32 %v1584, %v1518
  %v1589 = vmul.f32 %v1585, %v1533
  %v1590 = vmul.f32 %v1586, %v1548
  %v1591 = vmul.f32 %v1587, %v1563
  %v1592 = vadd.f32 %v1588, 0.2548296
  %v1593 = vadd.f32 %v1589, 0.2548296
  %v1594 = vadd.f32 %v1590, 0.2548296
  %v1595 = vadd.f32 %v1591, 0.2548296
  %v1596 = vmul.f32 %v1592, %v1518
  %v1597 = vmul.f32 %v1593, %v1533
  %v1598 = vmul.f32 %v1594, %v1548
  %v1599 = vmul.f32 %v1595, %v1563
  %v1600 = vsub.f32 0.0, %v1492
  %v1601 = vsub.f32 0.0, %v1493
  %v1602 = vsub.f32 0.0, %v1494
  %v1603 = vsub.f32 0.0, %v1495
  %v1604 = vmul.f32 %v1600, %v1492
  %v1605 = vmul.f32 %v1601, %v1493
  %v1606 = vmul.f32 %v1602, %v1494
  %v1607 = vmul.f32 %v1603, %v1495
  %v1608 = vmul.f32 %v1604, 1.442695
  %v1609 = vpow.pop %v1608
  %v1610 = vmul.f32 %v1605, 1.442695
  %v1611 = vpow.pop %v1610
  %v1612 = vmul.f32 %v1606, 1.442695
  %v1613 = vpow.pop %v1612
  %v1614 = vmul.f32 %v1607, 1.442695
  %v1615 = vpow.pop %v1614
  %v1616 = vmul.f32 %v1596, %v1609
  %v1617 = vmul.f32 %v1597, %v1611
  %v1618 = vmul.f32 %v1598, %v1613
  %v1619 = vmul.f32 %v1599, %v1615
  %v1620 = vsub.f32 1.0, %v1616
  %v1621 = vsub.f32 1.0, %v1617
  %v1622 = vsub.f32 1.0, %v1618
  %v1623 = vsub.f32 1.0, %v1619
  %v1624 = vmul.f32 %v1488, %v1620
  %v1625 = vmul.f32 %v1489, %v1621
  %v1626 = vmul.f32 %v1490, %v1622
  %v1627 = vmul.f32 %v1491, %v1623
  %v1628 = vadd.f32 %v1624, 1.0
  %v1629 = vadd.f32 %v1625, 1.0
  %v1630 = vadd.f32 %v1626, 1.0
  %v1631 = vadd.f32 %v1627, 1.0
  %v1632 = vmul.f32 %v1476, %v1628
  %v1633 = vmul.f32 %v1477, %v1629
  %v1634 = vmul.f32 %v1478, %v1630
  %v1635 = vmul.f32 %v1479, %v1631
  %s1636 = scalar_lea.vmem %s7, 256
  %v1637 = vld [vmem:[%s1636] sm:$0xff]
  %v1638 = vld [vmem:[%s1636 + $0x8] sm:$0xff]
  %v1639 = vld [vmem:[%s1636 + $0x10] sm:$0xff]
  %v1640 = vld [vmem:[%s1636 + $0x18] sm:$0xff]
  %v1641 = vld [vmem:[%s1636 + $0x20] sm:$0xff]
  %v1642 = vld [vmem:[%s1636 + $0x28] sm:$0xff]
  %v1643 = vld [vmem:[%s1636 + $0x30] sm:$0xff]
  %v1644 = vld [vmem:[%s1636 + $0x38] sm:$0xff]
  %v1645 = vld [vmem:[%s1636 + $0x40] sm:$0xff]
  %v1646 = vld [vmem:[%s1636 + $0x48] sm:$0xff]
  %v1647 = vld [vmem:[%s1636 + $0x50] sm:$0xff]
  %v1648 = vld [vmem:[%s1636 + $0x58] sm:$0xff]
  %v1649 = vld [vmem:[%s1636 + $0x60] sm:$0xff]
  %v1650 = vld [vmem:[%s1636 + $0x68] sm:$0xff]
  %v1651 = vld [vmem:[%s1636 + $0x70] sm:$0xff]
  %v1652 = vld [vmem:[%s1636 + $0x78] sm:$0xff]
  %v1653 = vld [vmem:[%s1636 + $0x80] sm:$0xff]
  %v1654 = vld [vmem:[%s1636 + $0x88] sm:$0xff]
  %v1655 = vld [vmem:[%s1636 + $0x90] sm:$0xff]
  %v1656 = vld [vmem:[%s1636 + $0x98] sm:$0xff]
  %v1657 = vld [vmem:[%s1636 + $0xa0] sm:$0xff]
  %v1658 = vld [vmem:[%s1636 + $0xa8] sm:$0xff]
  %v1659 = vld [vmem:[%s1636 + $0xb0] sm:$0xff]
  %v1660 = vld [vmem:[%s1636 + $0xb8] sm:$0xff]
  %v1661 = vld [vmem:[%s1636 + $0xc0] sm:$0xff]
  %v1662 = vld [vmem:[%s1636 + $0xc8] sm:$0xff]
  %v1663 = vld [vmem:[%s1636 + $0xd0] sm:$0xff]
  %v1664 = vld [vmem:[%s1636 + $0xd8] sm:$0xff]
  %v1665 = vld [vmem:[%s1636 + $0xe0] sm:$0xff]
  %v1666 = vld [vmem:[%s1636 + $0xe8] sm:$0xff]
  %v1667 = vld [vmem:[%s1636 + $0xf0] sm:$0xff]
  %v1668 = vld [vmem:[%s1636 + $0xf8] sm:$0xff]
  %v1669 = vld [vmem:[%s2 + $0x11] sm:$0x1]
  %v1670 = vperm.slane %v1669, 0
  %1671 = vmatpush.msra.mxu0 %v1652
  %1672 = vmatpush.msra.mxu0 %v1651
  %1673 = vmatpush.msra.mxu0 %v1650
  %1674 = vmatpush.msra.mxu0 %v1649
  %1675 = vmatpush.msra.mxu0 %v1648
  %1676 = vmatpush.msra.mxu0 %v1647
  %1677 = vmatpush.msra.mxu0 %v1646
  %1678 = vmatpush.msra.mxu0 %v1645
  %1679 = vmatpush.msra.mxu0 %v1644
  %1680 = vmatpush.msra.mxu0 %v1643
  %1681 = vmatpush.msra.mxu0 %v1642
  %1682 = vmatpush.msra.mxu0 %v1641
  %1683 = vmatpush.msra.mxu0 %v1640
  %1684 = vmatpush.msra.mxu0 %v1639
  %1685 = vmatpush.msra.mxu0 %v1638
  %1686 = vmatpush.msra.mxu0 %v1637
  %1687 = vmatmul.f32.gmra.mxu0 %v1632
  %v1688 = vpop.f32.mrf.mxu0
  %v1689 = vadd.f32 %v1670, %v1688
  %1690 = vmatmul.f32.gmra.mxu0 %v1634
  %v1691 = vpop.f32.mrf.mxu0
  %v1692 = vadd.f32 %v1670, %v1691
  %1693 = vdwg.mxu0
  %1694 = vmatpush.msra.mxu0 %v1668
  %1695 = vmatpush.msra.mxu0 %v1667
  %1696 = vmatpush.msra.mxu0 %v1666
  %1697 = vmatpush.msra.mxu0 %v1665
  %1698 = vmatpush.msra.mxu0 %v1664
  %1699 = vmatpush.msra.mxu0 %v1663
  %1700 = vmatpush.msra.mxu0 %v1662
  %1701 = vmatpush.msra.mxu0 %v1661
  %1702 = vmatpush.msra.mxu0 %v1660
  %1703 = vmatpush.msra.mxu0 %v1659
  %1704 = vmatpush.msra.mxu0 %v1658
  %1705 = vmatpush.msra.mxu0 %v1657
  %1706 = vmatpush.msra.mxu0 %v1656
  %1707 = vmatpush.msra.mxu0 %v1655
  %1708 = vmatpush.msra.mxu0 %v1654
  %1709 = vmatpush.msra.mxu0 %v1653
  %1710 = vmatmul.f32.gmra.mxu0 %v1633
  %v1711 = vpop.f32.mrf.mxu0
  %v1712 = vadd.f32 %v1689, %v1711
  %1713 = vmatmul.f32.gmra.mxu0 %v1635
  %v1714 = vpop.f32.mrf.mxu0
  %v1715 = vadd.f32 %v1692, %v1714
  %1716 = vdwg.mxu0
  %v1717 = vadd.f32 %v1398, %v1712
  %v1718 = vadd.f32 %v1399, %v1715
  %v1719 = vld [vmem:[%s2 + $0x12] sm:$0x1]
  %v1720 = vld [vmem:[%s2 + $0x13] sm:$0x1]
  %v1721 = vsel %vm39, %v1717, 0.0
  %1722 = vadd.xlane.f32.xlu0 %v1721
  %v1723 = vpop.xlane.xlu0 %1722
  %v1724 = vsel %vm39, %v1718, 0.0
  %1725 = vadd.xlane.f32.xlu0 %v1724
  %v1726 = vpop.xlane.xlu0 %1725
  %v1727 = vmul.f32 %v1723, 0.015625
  %v1728 = vmul.f32 %v1726, 0.015625
  %v1729 = vmul.f32 %v1717, %v1717
  %v1730 = vmul.f32 %v1718, %v1718
  %v1731 = vsel %vm39, %v1729, 0.0
  %1732 = vadd.xlane.f32.xlu0 %v1731
  %v1733 = vpop.xlane.xlu0 %1732
  %v1734 = vsel %vm39, %v1730, 0.0
  %1735 = vadd.xlane.f32.xlu0 %v1734
  %v1736 = vpop.xlane.xlu0 %1735
  %v1737 = vmul.f32 %v1733, 0.015625
  %v1738 = vmul.f32 %v1736, 0.015625
  %v1739 = vmul.f32 %v1727, %v1727
  %v1740 = vmul.f32 %v1728, %v1728
  %v1741 = vsub.f32 %v1737, %v1739
  %v1742 = vsub.f32 %v1738, %v1740
  %v1743 = vmax.f32 %v1741, 0.0
  %v1744 = vmax.f32 %v1742, 0.0
  %v1745 = vsub.f32 %v1717, %v1727
  %v1746 = vsub.f32 %v1718, %v1728
  %v1747 = vadd.f32 %v1743, 1e-12
  %v1748 = vadd.f32 %v1744, 1e-12
  %v1749 = vrsqrt.pop %v1747
  %v1750 = vmul.f32 %v1749, %v1747
  %v1751 = vmul.f32 %v1750, %v1749
  %v1752 = vmul.f32 0.5, %v1751
  %v1753 = vsub.f32 1.5, %v1752
  %v1754 = vmul.f32 %v1749, %v1753
  %vm1755 = vweird.f32 %v1747
  %vm1756 = vweird.f32 %v1749
  %vm1757 = vmor %vm1755, %vm1756
  %v1758 = vsel %vm1757, %v1749, %v1754
  %v1759 = vrsqrt.pop %v1748
  %v1760 = vmul.f32 %v1759, %v1748
  %v1761 = vmul.f32 %v1760, %v1759
  %v1762 = vmul.f32 0.5, %v1761
  %v1763 = vsub.f32 1.5, %v1762
  %v1764 = vmul.f32 %v1759, %v1763
  %vm1765 = vweird.f32 %v1748
  %vm1766 = vweird.f32 %v1759
  %vm1767 = vmor %vm1765, %vm1766
  %v1768 = vsel %vm1767, %v1759, %v1764
  %v1769 = vmul.f32 %v1745, %v1758
  %v1770 = vmul.f32 %v1746, %v1768
  %v1771 = vperm.slane %v1719, 0
  %v1772 = vmul.f32 %v1769, %v1771
  %v1773 = vmul.f32 %v1770, %v1771
  %v1774 = vperm.slane %v1720, 0
  %v1775 = vadd.f32 %v1772, %v1774
  %v1776 = vadd.f32 %v1773, %v1774
  %v1777 = vld [vmem:[%s8] sm:$0xff]
  %v1778 = vld [vmem:[%s8 + $0x8] sm:$0xff]
  %v1779 = vld [vmem:[%s8 + $0x10] sm:$0xff]
  %v1780 = vld [vmem:[%s8 + $0x18] sm:$0xff]
  %v1781 = vld [vmem:[%s8 + $0x20] sm:$0xff]
  %v1782 = vld [vmem:[%s8 + $0x28] sm:$0xff]
  %v1783 = vld [vmem:[%s8 + $0x30] sm:$0xff]
  %v1784 = vld [vmem:[%s8 + $0x38] sm:$0xff]
  %v1785 = vld [vmem:[%s9] sm:$0x1]
  %v1787 = vperm.slane %v1785, 0
  %v1790 = vsel %vm39, %v1775, 0
  %v1793 = vsel %vm39, %v1776, 0
  %1795 = vmatpush.msra.mxu0 0.0
  %1796 = vmatpush.msra.mxu0 0.0
  %1797 = vmatpush.msra.mxu0 0.0
  %1798 = vmatpush.msra.mxu0 0.0
  %1799 = vmatpush.msra.mxu0 0.0
  %1800 = vmatpush.msra.mxu0 0.0
  %1801 = vmatpush.msra.mxu0 0.0
  %1802 = vmatpush.msra.mxu0 0.0
  %1803 = vmatpush.msra.mxu0 %v1784
  %1804 = vmatpush.msra.mxu0 %v1783
  %1805 = vmatpush.msra.mxu0 %v1782
  %1806 = vmatpush.msra.mxu0 %v1781
  %1807 = vmatpush.msra.mxu0 %v1780
  %1808 = vmatpush.msra.mxu0 %v1779
  %1809 = vmatpush.msra.mxu0 %v1778
  %1810 = vmatpush.msra.mxu0 %v1777
  %1811 = vmatmul.f32.gmra.mxu0 %v1790
  %v1812 = vpop.f32.mrf.mxu0
  %v1813 = vadd.f32 %v1787, %v1812
  %1814 = vmatmul.f32.gmra.mxu0 %v1793
  %v1815 = vpop.f32.mrf.mxu0
  %v1816 = vadd.f32 %v1787, %v1815
  %1817 = vdwg.mxu0
  %1818 = vst [vmem:[%s10] sm:$0xff] %v1813
  %1819 = vst [vmem:[%s10 + $0x8] sm:$0xff] %v1816
  // Predicated region
  $region42: #{forward.1} parent=0 // pred_check
    _
  $region43: #{forward.1} parent=0 // pred_check_branch
    %1821 = sbr.rel (0) target = $region45
  $region44: #{forward.1} parent=0 // pred_region
    _
  $region45: #{forward.1} parent=0 // pred_fallthru
    _
  // Predicated region
  $region46: #{forward.1} parent=0 // pred_check
    _
  $region47: #{forward.1} parent=0 // pred_check_branch
    %1823 = sbr.rel (0) target = $region49
  $region48: #{forward.1} parent=0 // pred_region
    _
  $region49: #{forward.1} parent=0 // pred_fallthru
    _

</llo_original>
